<compile_context>
chip_gen: v6e
topology: v6e:2x2x1
jax: 0.10.0
libtpu: 0.0.40
codegen_flags: <defaults>
</compile_context>

<pallas_src>
import functools
import math

import jax
import jax.numpy as jnp
from jax.experimental import pallas as pl
from jax.experimental.pallas import tpu as pltpu

# ----------------------------- small synthetic config -----------------------------
VOCAB = 64        # synthetic vocab (real model: 250002)
MAX_POS = 40      # synthetic max positions (real model: 514)
HIDDEN = 32       # hidden_size (real model: 768)
HEADS = 4         # attention heads (real model: 12)
HEAD_DIM = HIDDEN // HEADS
INTER = 64        # intermediate FFN size (real model: 3072)
LAYERS = 2        # encoder layers (real model: 12)
EPS = 1e-5        # layer_norm_eps
PAD_IDX = 1       # RoBERTa padding_idx for positions
FEATURES = 3      # feature_count (classifier output)
BATCH = 2
SEQ = 8

_INV_SQRT2 = 0.7071067811865475


def _tile(dim, preferred, granule):
    """Pick a tile size: full dim if small enough, else the largest multiple of
    `granule` <= preferred that divides dim (fall back to the full dim)."""
    if dim <= preferred:
        return dim
    t = (preferred // granule) * granule
    while t >= granule:
        if dim % t == 0:
            return t
        t -= granule
    return dim


# ----------------------------- fused attention block -----------------------------
# h -> QKV -> multi-head attention -> Wo + bias + residual -> LayerNorm
def _attn_block_kernel(h_ref, wqkv_ref, bqkv_ref, m_ref, wo_ref, bo_ref,
                       g_ref, be_ref, o_ref, ctx_ref, *, heads, head_dim, scale, eps):
    # TODO(synk): at real S=512 split the KV dimension onto a grid axis with
    # online-softmax (flash-style) accumulators instead of the full (S, S) scores.
    h = h_ref[0]                                   # (S, H) f32  (also the residual)
    mask = m_ref[0]                                # (1, S) additive mask
    hidden = heads * head_dim

    # QKV projection: one MXU matmul, result stays in VMEM/registers.
    qkv = jnp.dot(h.astype(jnp.bfloat16), wqkv_ref[...],
                  preferred_element_type=jnp.float32) + bqkv_ref[...]   # (S, 3H)

    # Per-head attention (static unroll); contexts land in a VMEM scratch so the
    # Wo matmul and the final output store are lane-dense over the full HIDDEN.
    for hd in range(heads):
        c0 = hd * head_dim
        c1 = c0 + head_dim
        q = (qkv[:, c0:c1] * scale).astype(jnp.bfloat16)           # fold 1/sqrt(d) into q
        k = qkv[:, hidden + c0:hidden + c1].astype(jnp.bfloat16)
        v = qkv[:, 2 * hidden + c0:2 * hidden + c1].astype(jnp.bfloat16)
        s = jax.lax.dot_general(q, k, (((1,), (1,)), ((), ())),
                                preferred_element_type=jnp.float32)  # (S, S)
        s = s + mask
        s = s - jnp.max(s, axis=-1, keepdims=True)
        p = jnp.exp(s)
        p = p * pl.reciprocal(jnp.sum(p, axis=-1, keepdims=True), approx=True)
        ctx_ref[:, c0:c1] = jnp.dot(p.astype(jnp.bfloat16), v,
                                    preferred_element_type=jnp.float32)

    # Output projection + bias + residual + LayerNorm, all fused in the epilogue.
    y = jnp.dot(ctx_ref[...].astype(jnp.bfloat16), wo_ref[...],
                preferred_element_type=jnp.float32) + bo_ref[...] + h
    mean = jnp.mean(y, axis=-1, keepdims=True)
    var = jnp.mean((y - mean) ** 2, axis=-1, keepdims=True)
    o_ref[0] = (y - mean) * jax.lax.rsqrt(var + eps) * g_ref[...] + be_ref[...]


def attention_block(h, w_qkv, b_qkv, add_mask, wo, bo, gamma, beta):
    """h: (B, S, HIDDEN) f32; add_mask: (B, 1, S) additive.
    Returns LayerNorm(MHA(h) @ wo + bo + h) as (B, S, HIDDEN)."""
    B, S, H = h.shape
    kernel = functools.partial(_attn_block_kernel, heads=HEADS, head_dim=HEAD_DIM,
                               scale=1.0 / math.sqrt(HEAD_DIM), eps=EPS)
    return pl.pallas_call(
        kernel,
        out_shape=jax.ShapeDtypeStruct((B, S, H), jnp.float32),
        grid=(B,),
        in_specs=[
            pl.BlockSpec((1, S, H), lambda b: (b, 0, 0)),        # h (residual)
            pl.BlockSpec((H, 3 * H), lambda b: (0, 0)),          # w_qkv (resident)
            pl.BlockSpec((1, 3 * H), lambda b: (0, 0)),          # b_qkv
            pl.BlockSpec((1, 1, S), lambda b: (b, 0, 0)),        # additive mask
            pl.BlockSpec((H, H), lambda b: (0, 0)),              # wo (resident)
            pl.BlockSpec((1, H), lambda b: (0, 0)),              # bo
            pl.BlockSpec((1, H), lambda b: (0, 0)),              # ln gamma
            pl.BlockSpec((1, H), lambda b: (0, 0)),              # ln beta
        ],
        out_specs=pl.BlockSpec((1, S, H), lambda b: (b, 0, 0)),
        scratch_shapes=[pltpu.VMEM((S, H), jnp.float32)],        # per-head context slab
        compiler_params=pltpu.CompilerParams(dimension_semantics=("parallel",)),
    )(h, w_qkv, b_qkv.reshape(1, -1), add_mask, wo, bo.reshape(1, -1),
      gamma.reshape(1, -1), beta.reshape(1, -1))


# ----------------------------- fused FFN: wi -> GELU -> wf -> +residual -> LayerNorm -----------------------------
def _ffn_ln_kernel(x_ref, wi_ref, bi_ref, wf_ref, bf_ref, g_ref, be_ref, o_ref, *, eps):
    x = x_ref[...]                                                    # (tm, H) f32
    inter = jnp.dot(x.astype(jnp.bfloat16), wi_ref[...],
                    preferred_element_type=jnp.float32) + bi_ref[...]
    inter = 0.5 * inter * (1.0 + jax.lax.erf(inter * _INV_SQRT2))     # exact GELU
    y = jnp.dot(inter.astype(jnp.bfloat16), wf_ref[...],
                preferred_element_type=jnp.float32) + bf_ref[...] + x
    mean = jnp.mean(y, axis=-1, keepdims=True)
    var = jnp.mean((y - mean) ** 2, axis=-1, keepdims=True)
    o_ref[...] = (y - mean) * jax.lax.rsqrt(var + eps) * g_ref[...] + be_ref[...]


def ffn_ln(x, wi, bi, wf, bf, gamma, beta):
    M, H = x.shape
    _, I = wi.shape
    tm = _tile(M, 256, 8)
    kernel = functools.partial(_ffn_ln_kernel, eps=EPS)
    return pl.pallas_call(
        kernel,
        out_shape=jax.ShapeDtypeStruct((M, H), jnp.float32),
        grid=(M // tm,),
        in_specs=[
            pl.BlockSpec((tm, H), lambda i: (i, 0)),
            pl.BlockSpec((H, I), lambda i: (0, 0)),
            pl.BlockSpec((1, I), lambda i: (0, 0)),
            pl.BlockSpec((I, H), lambda i: (0, 0)),
            pl.BlockSpec((1, H), lambda i: (0, 0)),
            pl.BlockSpec((1, H), lambda i: (0, 0)),
            pl.BlockSpec((1, H), lambda i: (0, 0)),
        ],
        out_specs=pl.BlockSpec((tm, H), lambda i: (i, 0)),
        compiler_params=pltpu.CompilerParams(dimension_semantics=("parallel",)),
    )(x, wi, bi.reshape(1, -1), wf, bf.reshape(1, -1),
      gamma.reshape(1, -1), beta.reshape(1, -1))


# ----------------------------- plain LayerNorm (embeddings) -----------------------------
def _ln_kernel(x_ref, g_ref, b_ref, o_ref, *, eps):
    x = x_ref[...]
    mean = jnp.mean(x, axis=-1, keepdims=True)
    var = jnp.mean((x - mean) ** 2, axis=-1, keepdims=True)
    o_ref[...] = (x - mean) * jax.lax.rsqrt(var + eps) * g_ref[...] + b_ref[...]


def layernorm(x, gamma, beta):
    M, H = x.shape
    tm = _tile(M, 512, 8)
    kernel = functools.partial(_ln_kernel, eps=EPS)
    return pl.pallas_call(
        kernel,
        out_shape=jax.ShapeDtypeStruct((M, H), jnp.float32),
        grid=(M // tm,),
        in_specs=[
            pl.BlockSpec((tm, H), lambda i: (i, 0)),
            pl.BlockSpec((1, H), lambda i: (0, 0)),
            pl.BlockSpec((1, H), lambda i: (0, 0)),
        ],
        out_specs=pl.BlockSpec((tm, H), lambda i: (i, 0)),
        compiler_params=pltpu.CompilerParams(dimension_semantics=("parallel",)),
    )(x, gamma.reshape(1, -1), beta.reshape(1, -1))


# ----------------------------- parameters -----------------------------
def init_params(key):
    def nrm(k, shape, scale=0.02):
        return scale * jax.random.normal(k, shape, jnp.float32)

    keys = iter(jax.random.split(key, 128))
    p = {
        "word_emb": nrm(next(keys), (VOCAB, HIDDEN)),
        "pos_emb": nrm(next(keys), (MAX_POS, HIDDEN)),
        "type_emb": nrm(next(keys), (1, HIDDEN)),
        "emb_ln_g": jnp.ones((HIDDEN,), jnp.float32),
        "emb_ln_b": jnp.zeros((HIDDEN,), jnp.float32),
        "layers": [],
    }
    for _ in range(LAYERS):
        layer = {
            # fused Q|K|V projection weight, bf16 for the MXU
            "w_qkv": nrm(next(keys), (HIDDEN, 3 * HIDDEN)).astype(jnp.bfloat16),
            "b_qkv": jnp.zeros((3 * HIDDEN,), jnp.float32),
            "wo": nrm(next(keys), (HIDDEN, HIDDEN)).astype(jnp.bfloat16),
            "bo": jnp.zeros((HIDDEN,), jnp.float32),
            "ln1_g": jnp.ones((HIDDEN,), jnp.float32),
            "ln1_b": jnp.zeros((HIDDEN,), jnp.float32),
            "wi": nrm(next(keys), (HIDDEN, INTER)).astype(jnp.bfloat16),
            "bi": jnp.zeros((INTER,), jnp.float32),
            "wf": nrm(next(keys), (INTER, HIDDEN)).astype(jnp.bfloat16),
            "bf": jnp.zeros((HIDDEN,), jnp.float32),
            "ln2_g": jnp.ones((HIDDEN,), jnp.float32),
            "ln2_b": jnp.zeros((HIDDEN,), jnp.float32),
        }
        p["layers"].append(layer)
    # pre_classifier: hidden -> hidden (plain JAX head, f32)
    p["pre_w"] = nrm(next(keys), (HIDDEN, HIDDEN), scale=1.0 / math.sqrt(HIDDEN))
    p["pre_b"] = jnp.zeros((HIDDEN,), jnp.float32)
    # classifier: hidden -> features, xavier-normal init
    xav = math.sqrt(2.0 / (HIDDEN + FEATURES))
    p["cls_w"] = nrm(next(keys), (HIDDEN, FEATURES), scale=xav)
    p["cls_b"] = jnp.zeros((FEATURES,), jnp.float32)
    return p


# ----------------------------- forward pass -----------------------------
def xlm_roberta_module_forward(params, input_ids, attention_mask):
    B, S = input_ids.shape
    mask_f = attention_mask.astype(jnp.float32)

    # RoBERTa-style position ids: cumsum over mask, offset by padding_idx.
    position_ids = (jnp.cumsum(attention_mask, axis=1) * attention_mask + PAD_IDX).astype(jnp.int32)

    # Embeddings (gathers are glue); LayerNorm runs in a Pallas kernel.
    emb = (params["word_emb"][input_ids]
           + params["pos_emb"][position_ids]
           + params["type_emb"][0][None, None, :])
    emb = emb.reshape(B * S, HIDDEN).astype(jnp.float32)
    h = layernorm(emb, params["emb_ln_g"], params["emb_ln_b"])

    # Additive attention mask (B, 1, S).
    add_mask = ((1.0 - mask_f) * -1e9)[:, None, :].astype(jnp.float32)

    for lp in params["layers"]:
        # QKV + attention + Wo + bias + residual + LayerNorm, fully fused per batch.
        h = attention_block(h.reshape(B, S, HIDDEN), lp["w_qkv"], lp["b_qkv"],
                            add_mask, lp["wo"], lp["bo"], lp["ln1_g"], lp["ln1_b"])
        h = h.reshape(B * S, HIDDEN)                                   # free reshape
        # FFN fused: GELU intermediate stays in VMEM, residual + LN in epilogue.
        h = ffn_ln(h, lp["wi"], lp["bi"], lp["wf"], lp["bf"], lp["ln2_g"], lp["ln2_b"])

    hidden_state = h.reshape(B, S, HIDDEN)
    pooler = hidden_state[:, 0]                                        # CLS token, (B, HIDDEN)
    # Tiny head (M=B, N<=HIDDEN/FEATURES): sub-vreg tiles, so plain JAX.
    pooler = jnp.maximum(pooler @ params["pre_w"] + params["pre_b"], 0.0)
    # Dropout is identity in eval mode.
    logits = pooler @ params["cls_w"] + params["cls_b"]                # (B, FEATURES)
    return logits


# ----------------------------- main -----------------------------
if __name__ == "__main__":
    key = jax.random.PRNGKey(0)
    pkey, ikey = jax.random.split(key)
    params = init_params(pkey)

    input_ids = jax.random.randint(ikey, (BATCH, SEQ), 2, VOCAB, dtype=jnp.int32)
    # last two tokens of the second sequence are padding
    attention_mask = jnp.array(
        [[1] * SEQ,
         [1] * (SEQ - 2) + [0, 0]], dtype=jnp.int32)
    input_ids = jnp.where(attention_mask == 1, input_ids, PAD_IDX)

    logits = jax.jit(xlm_roberta_module_forward)(params, input_ids, attention_mask)
    jax.block_until_ready(logits)
    assert logits.shape == (BATCH, FEATURES)
    assert logits.dtype == jnp.float32
    print("KERNEL_OK")
</pallas_src>

<mosaic_0001>
module attributes {stable_mosaic.version = 11 : i64} {
  func.func @_ln_kernel(%arg0: i32, %arg1: memref<16x32xf32, #tpu.memory_space<vmem>>, %arg2: memref<1x32xf32, #tpu.memory_space<vmem>>, %arg3: memref<1x32xf32, #tpu.memory_space<vmem>>, %arg4: memref<16x32xf32, #tpu.memory_space<vmem>>) attributes {dimension_semantics = [#tpu.dimension_semantics<parallel>], iteration_bounds = array<i64: 1>, scalar_prefetch = 0 : i64, scratch_operands = 0 : i64, tpu.core_type = #tpu.core_type<tc>, window_params = [{transform_indices = @transform_0, window_bounds = array<i64: 16, 32>}, {pipeline_mode = #tpu.pipeline_mode<synchronous>, transform_indices = @transform_1, window_bounds = array<i64: 1, 32>}, {pipeline_mode = #tpu.pipeline_mode<synchronous>, transform_indices = @transform_2, window_bounds = array<i64: 1, 32>}, {transform_indices = @transform_3, window_bounds = array<i64: 16, 32>}]} {
    %c0 = arith.constant 0 : index
    %c0_0 = arith.constant 0 : index
    %0 = vector.load %arg1[%c0, %c0_0] : memref<16x32xf32, #tpu.memory_space<vmem>>, vector<16x32xf32>
    %cst = arith.constant dense<0.000000e+00> : vector<16xf32>
    %1 = vector.multi_reduction <add>, %0, %cst [1] : vector<16x32xf32> to vector<16xf32>
    %2 = vector.shape_cast %1 : vector<16xf32> to vector<16x1xf32>
    %cst_1 = arith.constant 3.200000e+01 : f32
    %3 = vector.broadcast %cst_1 : f32 to vector<16x1xf32>
    %4 = arith.divf %2, %3 : vector<16x1xf32>
    %5 = vector.broadcast %4 : vector<16x1xf32> to vector<16x32xf32>
    %6 = arith.subf %0, %5 : vector<16x32xf32>
    %7 = arith.mulf %6, %6 : vector<16x32xf32>
    %cst_2 = arith.constant dense<0.000000e+00> : vector<16xf32>
    %8 = vector.multi_reduction <add>, %7, %cst_2 [1] : vector<16x32xf32> to vector<16xf32>
    %9 = vector.shape_cast %8 : vector<16xf32> to vector<16x1xf32>
    %cst_3 = arith.constant 3.200000e+01 : f32
    %10 = vector.broadcast %cst_3 : f32 to vector<16x1xf32>
    %11 = arith.divf %9, %10 : vector<16x1xf32>
    %12 = vector.broadcast %4 : vector<16x1xf32> to vector<16x32xf32>
    %13 = arith.subf %0, %12 : vector<16x32xf32>
    %cst_4 = arith.constant 9.99999974E-6 : f32
    %14 = vector.broadcast %cst_4 : f32 to vector<16x1xf32>
    %15 = arith.addf %11, %14 : vector<16x1xf32>
    %16 = math.rsqrt %15 : vector<16x1xf32>
    %17 = vector.broadcast %16 : vector<16x1xf32> to vector<16x32xf32>
    %18 = arith.mulf %13, %17 : vector<16x32xf32>
    %c0_5 = arith.constant 0 : index
    %c0_6 = arith.constant 0 : index
    %19 = vector.load %arg2[%c0_5, %c0_6] : memref<1x32xf32, #tpu.memory_space<vmem>>, vector<1x32xf32>
    %20 = vector.broadcast %19 : vector<1x32xf32> to vector<16x32xf32>
    %21 = arith.mulf %18, %20 : vector<16x32xf32>
    %c0_7 = arith.constant 0 : index
    %c0_8 = arith.constant 0 : index
    %22 = vector.load %arg3[%c0_7, %c0_8] : memref<1x32xf32, #tpu.memory_space<vmem>>, vector<1x32xf32>
    %23 = vector.broadcast %22 : vector<1x32xf32> to vector<16x32xf32>
    %24 = arith.addf %21, %23 : vector<16x32xf32>
    %c0_9 = arith.constant 0 : index
    %c0_10 = arith.constant 0 : index
    %25 = vector.load %arg4[%c0_9, %c0_10] : memref<16x32xf32, #tpu.memory_space<vmem>>, vector<16x32xf32>
    tpu.vector_store %arg4[%c0_9, %c0_10], %24 {strides = array<i32>} : memref<16x32xf32, #tpu.memory_space<vmem>>, vector<16x32xf32>,
    return
  }
  func.func @transform_0(%arg0: i32) -> (i32, i32) {
    %c0_i32 = arith.constant 0 : i32
    %c0_i32_0 = arith.constant 0 : i32
    return %arg0, %c0_i32 : i32, i32
  }
  func.func @transform_1(%arg0: i32) -> (i32, i32) {
    %c0_i32 = arith.constant 0 : i32
    %c0_i32_0 = arith.constant 0 : i32
    %c0_i32_1 = arith.constant 0 : i32
    return %c0_i32, %c0_i32_0 : i32, i32
  }
  func.func @transform_2(%arg0: i32) -> (i32, i32) {
    %c0_i32 = arith.constant 0 : i32
    %c0_i32_0 = arith.constant 0 : i32
    %c0_i32_1 = arith.constant 0 : i32
    return %c0_i32, %c0_i32_0 : i32, i32
  }
  func.func @transform_3(%arg0: i32) -> (i32, i32) {
    %c0_i32 = arith.constant 0 : i32
    %c0_i32_0 = arith.constant 0 : i32
    return %arg0, %c0_i32 : i32, i32
  }
}

module attributes {stable_mosaic.version = 11 : i64} {
  func.func @_attn_block_kernel(%arg0: i32, %arg1: memref<1x8x32xf32, #tpu.memory_space<vmem>>, %arg2: memref<32x96xbf16, #tpu.memory_space<vmem>>, %arg3: memref<1x96xf32, #tpu.memory_space<vmem>>, %arg4: memref<1x1x8xf32, #tpu.memory_space<vmem>>, %arg5: memref<32x32xbf16, #tpu.memory_space<vmem>>, %arg6: memref<1x32xf32, #tpu.memory_space<vmem>>, %arg7: memref<1x32xf32, #tpu.memory_space<vmem>>, %arg8: memref<1x32xf32, #tpu.memory_space<vmem>>, %arg9: memref<1x8x32xf32, #tpu.memory_space<vmem>>, %arg10: memref<8x32xf32, #tpu.memory_space<vmem>>) attributes {dimension_semantics = [#tpu.dimension_semantics<parallel>], iteration_bounds = array<i64: 2>, scalar_prefetch = 0 : i64, scratch_operands = 1 : i64, tpu.core_type = #tpu.core_type<tc>, window_params = [{transform_indices = @transform_0, window_bounds = array<i64: 1, 8, 32>}, {pipeline_mode = #tpu.pipeline_mode<synchronous>, transform_indices = @transform_1, window_bounds = array<i64: 32, 96>}, {pipeline_mode = #tpu.pipeline_mode<synchronous>, transform_indices = @transform_2, window_bounds = array<i64: 1, 96>}, {transform_indices = @transform_3, window_bounds = array<i64: 1, 1, 8>}, {pipeline_mode = #tpu.pipeline_mode<synchronous>, transform_indices = @transform_4, window_bounds = array<i64: 32, 32>}, {pipeline_mode = #tpu.pipeline_mode<synchronous>, transform_indices = @transform_5, window_bounds = array<i64: 1, 32>}, {pipeline_mode = #tpu.pipeline_mode<synchronous>, transform_indices = @transform_6, window_bounds = array<i64: 1, 32>}, {pipeline_mode = #tpu.pipeline_mode<synchronous>, transform_indices = @transform_7, window_bounds = array<i64: 1, 32>}, {transform_indices = @transform_8, window_bounds = array<i64: 1, 8, 32>}]} {
    %c0 = arith.constant 0 : index
    %c0_0 = arith.constant 0 : index
    %c0_1 = arith.constant 0 : index
    %0 = vector.load %arg1[%c0, %c0_0, %c0_1] : memref<1x8x32xf32, #tpu.memory_space<vmem>>, vector<1x8x32xf32>
    %1 = vector.shape_cast %0 : vector<1x8x32xf32> to vector<8x32xf32>
    %c0_2 = arith.constant 0 : index
    %c0_3 = arith.constant 0 : index
    %c0_4 = arith.constant 0 : index
    %2 = vector.load %arg4[%c0_2, %c0_3, %c0_4] : memref<1x1x8xf32, #tpu.memory_space<vmem>>, vector<1x1x8xf32>
    %3 = vector.shape_cast %2 : vector<1x1x8xf32> to vector<1x8xf32>
    %4 = arith.truncf %1 : vector<8x32xf32> to vector<8x32xbf16>
    %c0_5 = arith.constant 0 : index
    %c0_6 = arith.constant 0 : index
    %5 = vector.load %arg2[%c0_5, %c0_6] : memref<32x96xbf16, #tpu.memory_space<vmem>>, vector<32x96xbf16>
    %cst = arith.constant dense<0.000000e+00> : vector<8x96xf32>
    %6 = tpu.matmul %4, %5, %cst {dimension_numbers = #tpu.dot_dimension_numbers<[1], [0], [0], [1], [0, 0, 1, 1], [], []>} : vector<8x32xbf16>, vector<32x96xbf16>, vector<8x96xf32> -> vector<8x96xf32>
    %c0_7 = arith.constant 0 : index
    %c0_8 = arith.constant 0 : index
    %7 = vector.load %arg3[%c0_7, %c0_8] : memref<1x96xf32, #tpu.memory_space<vmem>>, vector<1x96xf32>
    %8 = vector.broadcast %7 : vector<1x96xf32> to vector<8x96xf32>
    %9 = arith.addf %6, %8 : vector<8x96xf32>
    %10 = vector.extract_strided_slice %9 {offsets = [0, 0], sizes = [8, 8], strides = [1, 1]} : vector<8x96xf32> to vector<8x8xf32>
    %cst_9 = arith.constant 0.353553385 : f32
    %11 = vector.broadcast %cst_9 : f32 to vector<8x8xf32>
    %12 = arith.mulf %10, %11 : vector<8x8xf32>
    %13 = arith.truncf %12 : vector<8x8xf32> to vector<8x8xbf16>
    %14 = vector.extract_strided_slice %9 {offsets = [0, 32], sizes = [8, 8], strides = [1, 1]} : vector<8x96xf32> to vector<8x8xf32>
    %15 = arith.truncf %14 : vector<8x8xf32> to vector<8x8xbf16>
    %16 = vector.extract_strided_slice %9 {offsets = [0, 64], sizes = [8, 8], strides = [1, 1]} : vector<8x96xf32> to vector<8x8xf32>
    %17 = arith.truncf %16 : vector<8x8xf32> to vector<8x8xbf16>
    %cst_10 = arith.constant dense<0.000000e+00> : vector<8x8xf32>
    %18 = tpu.matmul %13, %15, %cst_10 {dimension_numbers = #tpu.dot_dimension_numbers<[1], [1], [0], [0], [0, 0, 1, 0], [], []>} : vector<8x8xbf16>, vector<8x8xbf16>, vector<8x8xf32> -> vector<8x8xf32>
    %19 = vector.broadcast %3 : vector<1x8xf32> to vector<8x8xf32>
    %20 = arith.addf %18, %19 : vector<8x8xf32>
    %cst_11 = arith.constant dense<0xFF800000> : vector<8xf32>
    %21 = vector.multi_reduction <maximumf>, %20, %cst_11 [1] : vector<8x8xf32> to vector<8xf32>
    %22 = vector.shape_cast %21 : vector<8xf32> to vector<8x1xf32>
    %23 = vector.broadcast %22 : vector<8x1xf32> to vector<8x8xf32>
    %24 = arith.subf %20, %23 : vector<8x8xf32>
    %25 = math.exp %24 : vector<8x8xf32>
    %cst_12 = arith.constant dense<0.000000e+00> : vector<8xf32>
    %26 = vector.multi_reduction <add>, %25, %cst_12 [1] : vector<8x8xf32> to vector<8xf32>
    %27 = vector.shape_cast %26 : vector<8xf32> to vector<8x1xf32>
    %28 = tpu.reciprocal %27 {approx = true} : vector<8x1xf32> -> vector<8x1xf32>
    %29 = vector.broadcast %28 : vector<8x1xf32> to vector<8x8xf32>
    %30 = arith.mulf %25, %29 : vector<8x8xf32>
    %31 = arith.truncf %30 : vector<8x8xf32> to vector<8x8xbf16>
    %cst_13 = arith.constant dense<0.000000e+00> : vector<8x8xf32>
    %32 = tpu.matmul %31, %17, %cst_13 {dimension_numbers = #tpu.dot_dimension_numbers<[1], [0], [0], [1], [0, 0, 1, 1], [], []>} : vector<8x8xbf16>, vector<8x8xbf16>, vector<8x8xf32> -> vector<8x8xf32>
    %c0_14 = arith.constant 0 : index
    %c0_15 = arith.constant 0 : index
    %33 = vector.load %arg10[%c0_14, %c0_15] : memref<8x32xf32, #tpu.memory_space<vmem>>, vector<8x8xf32>
    tpu.vector_store %arg10[%c0_14, %c0_15], %32 {strides = array<i32>} : memref<8x32xf32, #tpu.memory_space<vmem>>, vector<8x8xf32>,
    %34 = vector.extract_strided_slice %9 {offsets = [0, 8], sizes = [8, 8], strides = [1, 1]} : vector<8x96xf32> to vector<8x8xf32>
    %cst_16 = arith.constant 0.353553385 : f32
    %35 = vector.broadcast %cst_16 : f32 to vector<8x8xf32>
    %36 = arith.mulf %34, %35 : vector<8x8xf32>
    %37 = arith.truncf %36 : vector<8x8xf32> to vector<8x8xbf16>
    %38 = vector.extract_strided_slice %9 {offsets = [0, 40], sizes = [8, 8], strides = [1, 1]} : vector<8x96xf32> to vector<8x8xf32>
    %39 = arith.truncf %38 : vector<8x8xf32> to vector<8x8xbf16>
    %40 = vector.extract_strided_slice %9 {offsets = [0, 72], sizes = [8, 8], strides = [1, 1]} : vector<8x96xf32> to vector<8x8xf32>
    %41 = arith.truncf %40 : vector<8x8xf32> to vector<8x8xbf16>
    %cst_17 = arith.constant dense<0.000000e+00> : vector<8x8xf32>
    %42 = tpu.matmul %37, %39, %cst_17 {dimension_numbers = #tpu.dot_dimension_numbers<[1], [1], [0], [0], [0, 0, 1, 0], [], []>} : vector<8x8xbf16>, vector<8x8xbf16>, vector<8x8xf32> -> vector<8x8xf32>
    %43 = vector.broadcast %3 : vector<1x8xf32> to vector<8x8xf32>
    %44 = arith.addf %42, %43 : vector<8x8xf32>
    %cst_18 = arith.constant dense<0xFF800000> : vector<8xf32>
    %45 = vector.multi_reduction <maximumf>, %44, %cst_18 [1] : vector<8x8xf32> to vector<8xf32>
    %46 = vector.shape_cast %45 : vector<8xf32> to vector<8x1xf32>
    %47 = vector.broadcast %46 : vector<8x1xf32> to vector<8x8xf32>
    %48 = arith.subf %44, %47 : vector<8x8xf32>
    %49 = math.exp %48 : vector<8x8xf32>
    %cst_19 = arith.constant dense<0.000000e+00> : vector<8xf32>
    %50 = vector.multi_reduction <add>, %49, %cst_19 [1] : vector<8x8xf32> to vector<8xf32>
    %51 = vector.shape_cast %50 : vector<8xf32> to vector<8x1xf32>
    %52 = tpu.reciprocal %51 {approx = true} : vector<8x1xf32> -> vector<8x1xf32>
    %53 = vector.broadcast %52 : vector<8x1xf32> to vector<8x8xf32>
    %54 = arith.mulf %49, %53 : vector<8x8xf32>
    %55 = arith.truncf %54 : vector<8x8xf32> to vector<8x8xbf16>
    %cst_20 = arith.constant dense<0.000000e+00> : vector<8x8xf32>
    %56 = tpu.matmul %55, %41, %cst_20 {dimension_numbers = #tpu.dot_dimension_numbers<[1], [0], [0], [1], [0, 0, 1, 1], [], []>} : vector<8x8xbf16>, vector<8x8xbf16>, vector<8x8xf32> -> vector<8x8xf32>
    %c0_21 = arith.constant 0 : index
    %c8 = arith.constant 8 : index
    %57 = vector.load %arg10[%c0_21, %c8] : memref<8x32xf32, #tpu.memory_space<vmem>>, vector<8x8xf32>
    tpu.vector_store %arg10[%c0_21, %c8], %56 {strides = array<i32>} : memref<8x32xf32, #tpu.memory_space<vmem>>, vector<8x8xf32>,
    %58 = vector.extract_strided_slice %9 {offsets = [0, 16], sizes = [8, 8], strides = [1, 1]} : vector<8x96xf32> to vector<8x8xf32>
    %cst_22 = arith.constant 0.353553385 : f32
    %59 = vector.broadcast %cst_22 : f32 to vector<8x8xf32>
    %60 = arith.mulf %58, %59 : vector<8x8xf32>
    %61 = arith.truncf %60 : vector<8x8xf32> to vector<8x8xbf16>
    %62 = vector.extract_strided_slice %9 {offsets = [0, 48], sizes = [8, 8], strides = [1, 1]} : vector<8x96xf32> to vector<8x8xf32>
    %63 = arith.truncf %62 : vector<8x8xf32> to vector<8x8xbf16>
    %64 = vector.extract_strided_slice %9 {offsets = [0, 80], sizes = [8, 8], strides = [1, 1]} : vector<8x96xf32> to vector<8x8xf32>
    %65 = arith.truncf %64 : vector<8x8xf32> to vector<8x8xbf16>
    %cst_23 = arith.constant dense<0.000000e+00> : vector<8x8xf32>
    %66 = tpu.matmul %61, %63, %cst_23 {dimension_numbers = #tpu.dot_dimension_numbers<[1], [1], [0], [0], [0, 0, 1, 0], [], []>} : vector<8x8xbf16>, vector<8x8xbf16>, vector<8x8xf32> -> vector<8x8xf32>
    %67 = vector.broadcast %3 : vector<1x8xf32> to vector<8x8xf32>
    %68 = arith.addf %66, %67 : vector<8x8xf32>
    %cst_24 = arith.constant dense<0xFF800000> : vector<8xf32>
    %69 = vector.multi_reduction <maximumf>, %68, %cst_24 [1] : vector<8x8xf32> to vector<8xf32>
    %70 = vector.shape_cast %69 : vector<8xf32> to vector<8x1xf32>
    %71 = vector.broadcast %70 : vector<8x1xf32> to vector<8x8xf32>
    %72 = arith.subf %68, %71 : vector<8x8xf32>
    %73 = math.exp %72 : vector<8x8xf32>
    %cst_25 = arith.constant dense<0.000000e+00> : vector<8xf32>
    %74 = vector.multi_reduction <add>, %73, %cst_25 [1] : vector<8x8xf32> to vector<8xf32>
    %75 = vector.shape_cast %74 : vector<8xf32> to vector<8x1xf32>
    %76 = tpu.reciprocal %75 {approx = true} : vector<8x1xf32> -> vector<8x1xf32>
    %77 = vector.broadcast %76 : vector<8x1xf32> to vector<8x8xf32>
    %78 = arith.mulf %73, %77 : vector<8x8xf32>
    %79 = arith.truncf %78 : vector<8x8xf32> to vector<8x8xbf16>
    %cst_26 = arith.constant dense<0.000000e+00> : vector<8x8xf32>
    %80 = tpu.matmul %79, %65, %cst_26 {dimension_numbers = #tpu.dot_dimension_numbers<[1], [0], [0], [1], [0, 0, 1, 1], [], []>} : vector<8x8xbf16>, vector<8x8xbf16>, vector<8x8xf32> -> vector<8x8xf32>
    %c0_27 = arith.constant 0 : index
    %c16 = arith.constant 16 : index
    %81 = vector.load %arg10[%c0_27, %c16] : memref<8x32xf32, #tpu.memory_space<vmem>>, vector<8x8xf32>
    tpu.vector_store %arg10[%c0_27, %c16], %80 {strides = array<i32>} : memref<8x32xf32, #tpu.memory_space<vmem>>, vector<8x8xf32>,
    %82 = vector.extract_strided_slice %9 {offsets = [0, 24], sizes = [8, 8], strides = [1, 1]} : vector<8x96xf32> to vector<8x8xf32>
    %cst_28 = arith.constant 0.353553385 : f32
    %83 = vector.broadcast %cst_28 : f32 to vector<8x8xf32>
    %84 = arith.mulf %82, %83 : vector<8x8xf32>
    %85 = arith.truncf %84 : vector<8x8xf32> to vector<8x8xbf16>
    %86 = vector.extract_strided_slice %9 {offsets = [0, 56], sizes = [8, 8], strides = [1, 1]} : vector<8x96xf32> to vector<8x8xf32>
    %87 = arith.truncf %86 : vector<8x8xf32> to vector<8x8xbf16>
    %88 = vector.extract_strided_slice %9 {offsets = [0, 88], sizes = [8, 8], strides = [1, 1]} : vector<8x96xf32> to vector<8x8xf32>
    %89 = arith.truncf %88 : vector<8x8xf32> to vector<8x8xbf16>
    %cst_29 = arith.constant dense<0.000000e+00> : vector<8x8xf32>
    %90 = tpu.matmul %85, %87, %cst_29 {dimension_numbers = #tpu.dot_dimension_numbers<[1], [1], [0], [0], [0, 0, 1, 0], [], []>} : vector<8x8xbf16>, vector<8x8xbf16>, vector<8x8xf32> -> vector<8x8xf32>
    %91 = vector.broadcast %3 : vector<1x8xf32> to vector<8x8xf32>
    %92 = arith.addf %90, %91 : vector<8x8xf32>
    %cst_30 = arith.constant dense<0xFF800000> : vector<8xf32>
    %93 = vector.multi_reduction <maximumf>, %92, %cst_30 [1] : vector<8x8xf32> to vector<8xf32>
    %94 = vector.shape_cast %93 : vector<8xf32> to vector<8x1xf32>
    %95 = vector.broadcast %94 : vector<8x1xf32> to vector<8x8xf32>
    %96 = arith.subf %92, %95 : vector<8x8xf32>
    %97 = math.exp %96 : vector<8x8xf32>
    %cst_31 = arith.constant dense<0.000000e+00> : vector<8xf32>
    %98 = vector.multi_reduction <add>, %97, %cst_31 [1] : vector<8x8xf32> to vector<8xf32>
    %99 = vector.shape_cast %98 : vector<8xf32> to vector<8x1xf32>
    %100 = tpu.reciprocal %99 {approx = true} : vector<8x1xf32> -> vector<8x1xf32>
    %101 = vector.broadcast %100 : vector<8x1xf32> to vector<8x8xf32>
    %102 = arith.mulf %97, %101 : vector<8x8xf32>
    %103 = arith.truncf %102 : vector<8x8xf32> to vector<8x8xbf16>
    %cst_32 = arith.constant dense<0.000000e+00> : vector<8x8xf32>
    %104 = tpu.matmul %103, %89, %cst_32 {dimension_numbers = #tpu.dot_dimension_numbers<[1], [0], [0], [1], [0, 0, 1, 1], [], []>} : vector<8x8xbf16>, vector<8x8xbf16>, vector<8x8xf32> -> vector<8x8xf32>
    %c0_33 = arith.constant 0 : index
    %c24 = arith.constant 24 : index
    %105 = vector.load %arg10[%c0_33, %c24] : memref<8x32xf32, #tpu.memory_space<vmem>>, vector<8x8xf32>
    tpu.vector_store %arg10[%c0_33, %c24], %104 {strides = array<i32>} : memref<8x32xf32, #tpu.memory_space<vmem>>, vector<8x8xf32>,
    %c0_34 = arith.constant 0 : index
    %c0_35 = arith.constant 0 : index
    %106 = vector.load %arg10[%c0_34, %c0_35] : memref<8x32xf32, #tpu.memory_space<vmem>>, vector<8x32xf32>
    %107 = arith.truncf %106 : vector<8x32xf32> to vector<8x32xbf16>
    %c0_36 = arith.constant 0 : index
    %c0_37 = arith.constant 0 : index
    %108 = vector.load %arg5[%c0_36, %c0_37] : memref<32x32xbf16, #tpu.memory_space<vmem>>, vector<32x32xbf16>
    %cst_38 = arith.constant dense<0.000000e+00> : vector<8x32xf32>
    %109 = tpu.matmul %107, %108, %cst_38 {dimension_numbers = #tpu.dot_dimension_numbers<[1], [0], [0], [1], [0, 0, 1, 1], [], []>} : vector<8x32xbf16>, vector<32x32xbf16>, vector<8x32xf32> -> vector<8x32xf32>
    %c0_39 = arith.constant 0 : index
    %c0_40 = arith.constant 0 : index
    %110 = vector.load %arg6[%c0_39, %c0_40] : memref<1x32xf32, #tpu.memory_space<vmem>>, vector<1x32xf32>
    %111 = vector.broadcast %110 : vector<1x32xf32> to vector<8x32xf32>
    %112 = arith.addf %109, %111 : vector<8x32xf32>
    %113 = arith.addf %112, %1 : vector<8x32xf32>
    %cst_41 = arith.constant dense<0.000000e+00> : vector<8xf32>
    %114 = vector.multi_reduction <add>, %113, %cst_41 [1] : vector<8x32xf32> to vector<8xf32>
    %115 = vector.shape_cast %114 : vector<8xf32> to vector<8x1xf32>
    %cst_42 = arith.constant 3.200000e+01 : f32
    %116 = vector.broadcast %cst_42 : f32 to vector<8x1xf32>
    %117 = arith.divf %115, %116 : vector<8x1xf32>
    %118 = vector.broadcast %117 : vector<8x1xf32> to vector<8x32xf32>
    %119 = arith.subf %113, %118 : vector<8x32xf32>
    %120 = arith.mulf %119, %119 : vector<8x32xf32>
    %cst_43 = arith.constant dense<0.000000e+00> : vector<8xf32>
    %121 = vector.multi_reduction <add>, %120, %cst_43 [1] : vector<8x32xf32> to vector<8xf32>
    %122 = vector.shape_cast %121 : vector<8xf32> to vector<8x1xf32>
    %cst_44 = arith.constant 3.200000e+01 : f32
    %123 = vector.broadcast %cst_44 : f32 to vector<8x1xf32>
    %124 = arith.divf %122, %123 : vector<8x1xf32>
    %125 = vector.broadcast %117 : vector<8x1xf32> to vector<8x32xf32>
    %126 = arith.subf %113, %125 : vector<8x32xf32>
    %cst_45 = arith.constant 9.99999974E-6 : f32
    %127 = vector.broadcast %cst_45 : f32 to vector<8x1xf32>
    %128 = arith.addf %124, %127 : vector<8x1xf32>
    %129 = math.rsqrt %128 : vector<8x1xf32>
    %130 = vector.broadcast %129 : vector<8x1xf32> to vector<8x32xf32>
    %131 = arith.mulf %126, %130 : vector<8x32xf32>
    %c0_46 = arith.constant 0 : index
    %c0_47 = arith.constant 0 : index
    %132 = vector.load %arg7[%c0_46, %c0_47] : memref<1x32xf32, #tpu.memory_space<vmem>>, vector<1x32xf32>
    %133 = vector.broadcast %132 : vector<1x32xf32> to vector<8x32xf32>
    %134 = arith.mulf %131, %133 : vector<8x32xf32>
    %c0_48 = arith.constant 0 : index
    %c0_49 = arith.constant 0 : index
    %135 = vector.load %arg8[%c0_48, %c0_49] : memref<1x32xf32, #tpu.memory_space<vmem>>, vector<1x32xf32>
    %136 = vector.broadcast %135 : vector<1x32xf32> to vector<8x32xf32>
    %137 = arith.addf %134, %136 : vector<8x32xf32>
    %c0_50 = arith.constant 0 : index
    %c0_51 = arith.constant 0 : index
    %c0_52 = arith.constant 0 : index
    %138 = vector.load %arg9[%c0_50, %c0_51, %c0_52] : memref<1x8x32xf32, #tpu.memory_space<vmem>>, vector<1x8x32xf32>
    %139 = vector.shape_cast %138 : vector<1x8x32xf32> to vector<8x32xf32>
    %140 = vector.shape_cast %137 : vector<8x32xf32> to vector<1x8x32xf32>
    tpu.vector_store %arg9[%c0_50, %c0_51, %c0_52], %140 {strides = array<i32>} : memref<1x8x32xf32, #tpu.memory_space<vmem>>, vector<1x8x32xf32>,
    return
  }
  func.func @transform_0(%arg0: i32) -> (i32, i32, i32) {
    %c0_i32 = arith.constant 0 : i32
    %c0_i32_0 = arith.constant 0 : i32
    %c0_i32_1 = arith.constant 0 : i32
    return %arg0, %c0_i32, %c0_i32_0 : i32, i32, i32
  }
  func.func @transform_1(%arg0: i32) -> (i32, i32) {
    %c0_i32 = arith.constant 0 : i32
    %c0_i32_0 = arith.constant 0 : i32
    %c0_i32_1 = arith.constant 0 : i32
    return %c0_i32, %c0_i32_0 : i32, i32
  }
  func.func @transform_2(%arg0: i32) -> (i32, i32) {
    %c0_i32 = arith.constant 0 : i32
    %c0_i32_0 = arith.constant 0 : i32
    %c0_i32_1 = arith.constant 0 : i32
    return %c0_i32, %c0_i32_0 : i32, i32
  }
  func.func @transform_3(%arg0: i32) -> (i32, i32, i32) {
    %c0_i32 = arith.constant 0 : i32
    %c0_i32_0 = arith.constant 0 : i32
    %c0_i32_1 = arith.constant 0 : i32
    return %arg0, %c0_i32, %c0_i32_0 : i32, i32, i32
  }
  func.func @transform_4(%arg0: i32) -> (i32, i32) {
    %c0_i32 = arith.constant 0 : i32
    %c0_i32_0 = arith.constant 0 : i32
    %c0_i32_1 = arith.constant 0 : i32
    return %c0_i32, %c0_i32_0 : i32, i32
  }
  func.func @transform_5(%arg0: i32) -> (i32, i32) {
    %c0_i32 = arith.constant 0 : i32
    %c0_i32_0 = arith.constant 0 : i32
    %c0_i32_1 = arith.constant 0 : i32
    return %c0_i32, %c0_i32_0 : i32, i32
  }
  func.func @transform_6(%arg0: i32) -> (i32, i32) {
    %c0_i32 = arith.constant 0 : i32
    %c0_i32_0 = arith.constant 0 : i32
    %c0_i32_1 = arith.constant 0 : i32
    return %c0_i32, %c0_i32_0 : i32, i32
  }
  func.func @transform_7(%arg0: i32) -> (i32, i32) {
    %c0_i32 = arith.constant 0 : i32
    %c0_i32_0 = arith.constant 0 : i32
    %c0_i32_1 = arith.constant 0 : i32
    return %c0_i32, %c0_i32_0 : i32, i32
  }
  func.func @transform_8(%arg0: i32) -> (i32, i32, i32) {
    %c0_i32 = arith.constant 0 : i32
    %c0_i32_0 = arith.constant 0 : i32
    %c0_i32_1 = arith.constant 0 : i32
    return %arg0, %c0_i32, %c0_i32_0 : i32, i32, i32
  }
}

module attributes {stable_mosaic.version = 11 : i64} {
  func.func @_ffn_ln_kernel(%arg0: i32, %arg1: memref<16x32xf32, #tpu.memory_space<vmem>>, %arg2: memref<32x64xbf16, #tpu.memory_space<vmem>>, %arg3: memref<1x64xf32, #tpu.memory_space<vmem>>, %arg4: memref<64x32xbf16, #tpu.memory_space<vmem>>, %arg5: memref<1x32xf32, #tpu.memory_space<vmem>>, %arg6: memref<1x32xf32, #tpu.memory_space<vmem>>, %arg7: memref<1x32xf32, #tpu.memory_space<vmem>>, %arg8: memref<16x32xf32, #tpu.memory_space<vmem>>) attributes {dimension_semantics = [#tpu.dimension_semantics<parallel>], iteration_bounds = array<i64: 1>, scalar_prefetch = 0 : i64, scratch_operands = 0 : i64, tpu.core_type = #tpu.core_type<tc>, window_params = [{transform_indices = @transform_0, window_bounds = array<i64: 16, 32>}, {pipeline_mode = #tpu.pipeline_mode<synchronous>, transform_indices = @transform_1, window_bounds = array<i64: 32, 64>}, {pipeline_mode = #tpu.pipeline_mode<synchronous>, transform_indices = @transform_2, window_bounds = array<i64: 1, 64>}, {pipeline_mode = #tpu.pipeline_mode<synchronous>, transform_indices = @transform_3, window_bounds = array<i64: 64, 32>}, {pipeline_mode = #tpu.pipeline_mode<synchronous>, transform_indices = @transform_4, window_bounds = array<i64: 1, 32>}, {pipeline_mode = #tpu.pipeline_mode<synchronous>, transform_indices = @transform_5, window_bounds = array<i64: 1, 32>}, {pipeline_mode = #tpu.pipeline_mode<synchronous>, transform_indices = @transform_6, window_bounds = array<i64: 1, 32>}, {transform_indices = @transform_7, window_bounds = array<i64: 16, 32>}]} {
    %c0 = arith.constant 0 : index
    %c0_0 = arith.constant 0 : index
    %0 = vector.load %arg1[%c0, %c0_0] : memref<16x32xf32, #tpu.memory_space<vmem>>, vector<16x32xf32>
    %1 = arith.truncf %0 : vector<16x32xf32> to vector<16x32xbf16>
    %c0_1 = arith.constant 0 : index
    %c0_2 = arith.constant 0 : index
    %2 = vector.load %arg2[%c0_1, %c0_2] : memref<32x64xbf16, #tpu.memory_space<vmem>>, vector<32x64xbf16>
    %cst = arith.constant dense<0.000000e+00> : vector<16x64xf32>
    %3 = tpu.matmul %1, %2, %cst {dimension_numbers = #tpu.dot_dimension_numbers<[1], [0], [0], [1], [0, 0, 1, 1], [], []>} : vector<16x32xbf16>, vector<32x64xbf16>, vector<16x64xf32> -> vector<16x64xf32>
    %c0_3 = arith.constant 0 : index
    %c0_4 = arith.constant 0 : index
    %4 = vector.load %arg3[%c0_3, %c0_4] : memref<1x64xf32, #tpu.memory_space<vmem>>, vector<1x64xf32>
    %5 = vector.broadcast %4 : vector<1x64xf32> to vector<16x64xf32>
    %6 = arith.addf %3, %5 : vector<16x64xf32>
    %cst_5 = arith.constant 5.000000e-01 : f32
    %7 = vector.broadcast %cst_5 : f32 to vector<16x64xf32>
    %8 = arith.mulf %7, %6 : vector<16x64xf32>
    %cst_6 = arith.constant 0.707106769 : f32
    %9 = vector.broadcast %cst_6 : f32 to vector<16x64xf32>
    %10 = arith.mulf %6, %9 : vector<16x64xf32>
    %11 = math.erf %10 : vector<16x64xf32>
    %cst_7 = arith.constant 1.000000e+00 : f32
    %12 = vector.broadcast %cst_7 : f32 to vector<16x64xf32>
    %13 = arith.addf %12, %11 : vector<16x64xf32>
    %14 = arith.mulf %8, %13 : vector<16x64xf32>
    %15 = arith.truncf %14 : vector<16x64xf32> to vector<16x64xbf16>
    %c0_8 = arith.constant 0 : index
    %c0_9 = arith.constant 0 : index
    %16 = vector.load %arg4[%c0_8, %c0_9] : memref<64x32xbf16, #tpu.memory_space<vmem>>, vector<64x32xbf16>
    %cst_10 = arith.constant dense<0.000000e+00> : vector<16x32xf32>
    %17 = tpu.matmul %15, %16, %cst_10 {dimension_numbers = #tpu.dot_dimension_numbers<[1], [0], [0], [1], [0, 0, 1, 1], [], []>} : vector<16x64xbf16>, vector<64x32xbf16>, vector<16x32xf32> -> vector<16x32xf32>
    %c0_11 = arith.constant 0 : index
    %c0_12 = arith.constant 0 : index
    %18 = vector.load %arg5[%c0_11, %c0_12] : memref<1x32xf32, #tpu.memory_space<vmem>>, vector<1x32xf32>
    %19 = vector.broadcast %18 : vector<1x32xf32> to vector<16x32xf32>
    %20 = arith.addf %17, %19 : vector<16x32xf32>
    %21 = arith.addf %20, %0 : vector<16x32xf32>
    %cst_13 = arith.constant dense<0.000000e+00> : vector<16xf32>
    %22 = vector.multi_reduction <add>, %21, %cst_13 [1] : vector<16x32xf32> to vector<16xf32>
    %23 = vector.shape_cast %22 : vector<16xf32> to vector<16x1xf32>
    %cst_14 = arith.constant 3.200000e+01 : f32
    %24 = vector.broadcast %cst_14 : f32 to vector<16x1xf32>
    %25 = arith.divf %23, %24 : vector<16x1xf32>
    %26 = vector.broadcast %25 : vector<16x1xf32> to vector<16x32xf32>
    %27 = arith.subf %21, %26 : vector<16x32xf32>
    %28 = arith.mulf %27, %27 : vector<16x32xf32>
    %cst_15 = arith.constant dense<0.000000e+00> : vector<16xf32>
    %29 = vector.multi_reduction <add>, %28, %cst_15 [1] : vector<16x32xf32> to vector<16xf32>
    %30 = vector.shape_cast %29 : vector<16xf32> to vector<16x1xf32>
    %cst_16 = arith.constant 3.200000e+01 : f32
    %31 = vector.broadcast %cst_16 : f32 to vector<16x1xf32>
    %32 = arith.divf %30, %31 : vector<16x1xf32>
    %33 = vector.broadcast %25 : vector<16x1xf32> to vector<16x32xf32>
    %34 = arith.subf %21, %33 : vector<16x32xf32>
    %cst_17 = arith.constant 9.99999974E-6 : f32
    %35 = vector.broadcast %cst_17 : f32 to vector<16x1xf32>
    %36 = arith.addf %32, %35 : vector<16x1xf32>
    %37 = math.rsqrt %36 : vector<16x1xf32>
    %38 = vector.broadcast %37 : vector<16x1xf32> to vector<16x32xf32>
    %39 = arith.mulf %34, %38 : vector<16x32xf32>
    %c0_18 = arith.constant 0 : index
    %c0_19 = arith.constant 0 : index
    %40 = vector.load %arg6[%c0_18, %c0_19] : memref<1x32xf32, #tpu.memory_space<vmem>>, vector<1x32xf32>
    %41 = vector.broadcast %40 : vector<1x32xf32> to vector<16x32xf32>
    %42 = arith.mulf %39, %41 : vector<16x32xf32>
    %c0_20 = arith.constant 0 : index
    %c0_21 = arith.constant 0 : index
    %43 = vector.load %arg7[%c0_20, %c0_21] : memref<1x32xf32, #tpu.memory_space<vmem>>, vector<1x32xf32>
    %44 = vector.broadcast %43 : vector<1x32xf32> to vector<16x32xf32>
    %45 = arith.addf %42, %44 : vector<16x32xf32>
    %c0_22 = arith.constant 0 : index
    %c0_23 = arith.constant 0 : index
    %46 = vector.load %arg8[%c0_22, %c0_23] : memref<16x32xf32, #tpu.memory_space<vmem>>, vector<16x32xf32>
    tpu.vector_store %arg8[%c0_22, %c0_23], %45 {strides = array<i32>} : memref<16x32xf32, #tpu.memory_space<vmem>>, vector<16x32xf32>,
    return
  }
  func.func @transform_0(%arg0: i32) -> (i32, i32) {
    %c0_i32 = arith.constant 0 : i32
    %c0_i32_0 = arith.constant 0 : i32
    return %arg0, %c0_i32 : i32, i32
  }
  func.func @transform_1(%arg0: i32) -> (i32, i32) {
    %c0_i32 = arith.constant 0 : i32
    %c0_i32_0 = arith.constant 0 : i32
    %c0_i32_1 = arith.constant 0 : i32
    return %c0_i32, %c0_i32_0 : i32, i32
  }
  func.func @transform_2(%arg0: i32) -> (i32, i32) {
    %c0_i32 = arith.constant 0 : i32
    %c0_i32_0 = arith.constant 0 : i32
    %c0_i32_1 = arith.constant 0 : i32
    return %c0_i32, %c0_i32_0 : i32, i32
  }
  func.func @transform_3(%arg0: i32) -> (i32, i32) {
    %c0_i32 = arith.constant 0 : i32
    %c0_i32_0 = arith.constant 0 : i32
    %c0_i32_1 = arith.constant 0 : i32
    return %c0_i32, %c0_i32_0 : i32, i32
  }
  func.func @transform_4(%arg0: i32) -> (i32, i32) {
    %c0_i32 = arith.constant 0 : i32
    %c0_i32_0 = arith.constant 0 : i32
    %c0_i32_1 = arith.constant 0 : i32
    return %c0_i32, %c0_i32_0 : i32, i32
  }
  func.func @transform_5(%arg0: i32) -> (i32, i32) {
    %c0_i32 = arith.constant 0 : i32
    %c0_i32_0 = arith.constant 0 : i32
    %c0_i32_1 = arith.constant 0 : i32
    return %c0_i32, %c0_i32_0 : i32, i32
  }
  func.func @transform_6(%arg0: i32) -> (i32, i32) {
    %c0_i32 = arith.constant 0 : i32
    %c0_i32_0 = arith.constant 0 : i32
    %c0_i32_1 = arith.constant 0 : i32
    return %c0_i32, %c0_i32_0 : i32, i32
  }
  func.func @transform_7(%arg0: i32) -> (i32, i32) {
    %c0_i32 = arith.constant 0 : i32
    %c0_i32_0 = arith.constant 0 : i32
    return %arg0, %c0_i32 : i32, i32
  }
}

</mosaic_0001>

<llo_original>
// kernel: xlm_roberta_module_forward.5
$region0: #{xlm_roberta_module_forward.5}
  #allocation0 [shape = 'u32[]', space=smem, size = 0x4, offset = 0x4, fixed_abs, tag = 'smem constant byte address 0x4 - core index']
  #allocation1 [shape = 'u32[144,128]{1,0:T(1,128)}', space=vmem, size = 0x12000, scoped, tag = 'internal scratch']
  %s0 = inlined_call_operand.vmem [shape: f32[16,32], index: 0, kind: input, shape index: {}]
  %s1 = inlined_call_operand.vmem [shape: f32[1,32], index: 1, kind: input, shape index: {}]
  %s2 = inlined_call_operand.vmem [shape: f32[1,32], index: 2, kind: input, shape index: {}]
  %s3 = inlined_call_operand.vmem [shape: f32[16,32], index: 3, kind: output, shape index: {}]
  %s4 = sld [smem:[#allocation0]]
  $region22: #{xlm_roberta_module_forward.5} parent=0
    _
  %s6 = ssub.s32 1, %s4
  %s7 = scalar_select 0, %s6, %s4
  // Predicated region
  $region2: #{xlm_roberta_module_forward.5} parent=0 // pred_check
    _
  $region3: #{xlm_roberta_module_forward.5} parent=0 // pred_check_branch
    %9 = sbr.rel (0) target = $region5
  $region4: #{xlm_roberta_module_forward.5} parent=0 // pred_region
    _
  $region5: #{xlm_roberta_module_forward.5} parent=0 // pred_fallthru
    _
  // Predicated region
  $region6: #{xlm_roberta_module_forward.5} parent=0 // pred_check
    _
  $region7: #{xlm_roberta_module_forward.5} parent=0 // pred_check_branch
    %11 = sbr.rel (0) target = $region9
  $region8: #{xlm_roberta_module_forward.5} parent=0 // pred_region
    _
  $region9: #{xlm_roberta_module_forward.5} parent=0 // pred_fallthru
    _
  // Predicated region
  $region10: #{xlm_roberta_module_forward.5} parent=0 // pred_check
    _
  $region11: #{xlm_roberta_module_forward.5} parent=0 // pred_check_branch
    %13 = sbr.rel (0) target = $region13
  $region12: #{xlm_roberta_module_forward.5} parent=0 // pred_region
    _
  $region13: #{xlm_roberta_module_forward.5} parent=0 // pred_fallthru
    _
  %v14 = vld [vmem:[%s0] sm:$0xff]
  %v15 = vld [vmem:[%s0 + $0x8] sm:$0xff]
  %vm16 = vcmask 261120
  %v17 = vsel %vm16, %v14, 0.0
  %18 = vadd.xlane.f32.xlu0 %v17
  %v19 = vpop.xlane.xlu0 %18
  %v20 = vsel %vm16, %v15, 0.0
  %21 = vadd.xlane.f32.xlu0 %v20
  %v22 = vpop.xlane.xlu0 %21
  %v23 = vrcp.pop 32.0
  %v24 = vmul.f32 %v19, %v23
  %v25 = vmul.f32 %v22, %v23
  %v26 = vsub.f32 %v14, %v24
  %v27 = vsub.f32 %v15, %v25
  %v28 = vmul.f32 %v26, %v26
  %v29 = vmul.f32 %v27, %v27
  %v30 = vsel %vm16, %v28, 0.0
  %31 = vadd.xlane.f32.xlu0 %v30
  %v32 = vpop.xlane.xlu0 %31
  %v33 = vsel %vm16, %v29, 0.0
  %34 = vadd.xlane.f32.xlu0 %v33
  %v35 = vpop.xlane.xlu0 %34
  %v36 = vmul.f32 %v32, %v23
  %v37 = vmul.f32 %v35, %v23
  %v38 = vadd.f32 %v36, 1e-05
  %v39 = vadd.f32 %v37, 1e-05
  %v40 = vrsqrt.pop %v38
  %v41 = vrsqrt.pop %v39
  %v42 = vmul.f32 %v26, %v40
  %v43 = vmul.f32 %v27, %v41
  %v44 = vld [vmem:[%s1] sm:$0x1]
  %v46 = vlaneseq
  %v47 = vshrl.u32 %v46, 7
  %v48 = vsub.s32 0, %v47
  %v49 = vrot.slane %v44, %v48
  %v51 = vmul.f32 %v42, %v49
  %v52 = vmul.f32 %v43, %v49
  %v53 = vld [vmem:[%s2] sm:$0x1]
  %v55 = vlaneseq
  %v56 = vshrl.u32 %v55, 7
  %v57 = vsub.s32 0, %v56
  %v58 = vrot.slane %v53, %v57
  %v60 = vadd.f32 %v51, %v58
  %v61 = vadd.f32 %v52, %v58
  %62 = vst.msk [vmem:[%s3] sm:$0xff] %vm16, %v60
  %63 = vst.msk [vmem:[%s3 + $0x8] sm:$0xff] %vm16, %v61
  // Predicated region
  $region14: #{xlm_roberta_module_forward.5} parent=0 // pred_check
    _
  $region15: #{xlm_roberta_module_forward.5} parent=0 // pred_check_branch
    %65 = sbr.rel (0) target = $region17
  $region16: #{xlm_roberta_module_forward.5} parent=0 // pred_region
    _
  $region17: #{xlm_roberta_module_forward.5} parent=0 // pred_fallthru
    _
  // Predicated region
  $region18: #{xlm_roberta_module_forward.5} parent=0 // pred_check
    _
  $region19: #{xlm_roberta_module_forward.5} parent=0 // pred_check_branch
    %67 = sbr.rel (0) target = $region21
  $region20: #{xlm_roberta_module_forward.5} parent=0 // pred_region
    _
  $region21: #{xlm_roberta_module_forward.5} parent=0 // pred_fallthru
    _

// kernel: xlm_roberta_module_forward.7
$region0: #{xlm_roberta_module_forward.7}
  #allocation0 [shape = 'u32[]', space=smem, size = 0x4, offset = 0x4, fixed_abs, tag = 'smem constant byte address 0x4 - core index']
  #allocation1 [shape = 'u32[144,128]{1,0:T(1,128)}', space=vmem, size = 0x12000, scoped, tag = 'internal scratch']
  %s0 = inlined_call_operand.vmem [shape: f32[16,32], index: 0, kind: input, shape index: {}]
  %s1 = inlined_call_operand.vmem [shape: bf16[32,64], index: 1, kind: input, shape index: {}]
  %s2 = inlined_call_operand.vmem [shape: f32[1,64], index: 2, kind: input, shape index: {}]
  %s3 = inlined_call_operand.vmem [shape: bf16[64,32], index: 3, kind: input, shape index: {}]
  %s4 = inlined_call_operand.vmem [shape: f32[1,32], index: 4, kind: input, shape index: {}]
  %s5 = inlined_call_operand.vmem [shape: f32[1,32], index: 5, kind: input, shape index: {}]
  %s6 = inlined_call_operand.vmem [shape: f32[1,32], index: 6, kind: input, shape index: {}]
  %s7 = inlined_call_operand.vmem [shape: f32[16,32], index: 7, kind: output, shape index: {}]
  %s8 = sld [smem:[#allocation0]]
  $region38: #{xlm_roberta_module_forward.7} parent=0
    _
  %s10 = ssub.s32 1, %s8
  %s11 = scalar_select 0, %s10, %s8
  // Predicated region
  $region2: #{xlm_roberta_module_forward.7} parent=0 // pred_check
    _
  $region3: #{xlm_roberta_module_forward.7} parent=0 // pred_check_branch
    %13 = sbr.rel (0) target = $region5
  $region4: #{xlm_roberta_module_forward.7} parent=0 // pred_region
    _
  $region5: #{xlm_roberta_module_forward.7} parent=0 // pred_fallthru
    _
  // Predicated region
  $region6: #{xlm_roberta_module_forward.7} parent=0 // pred_check
    _
  $region7: #{xlm_roberta_module_forward.7} parent=0 // pred_check_branch
    %15 = sbr.rel (0) target = $region9
  $region8: #{xlm_roberta_module_forward.7} parent=0 // pred_region
    _
  $region9: #{xlm_roberta_module_forward.7} parent=0 // pred_fallthru
    _
  // Predicated region
  $region10: #{xlm_roberta_module_forward.7} parent=0 // pred_check
    _
  $region11: #{xlm_roberta_module_forward.7} parent=0 // pred_check_branch
    %17 = sbr.rel (0) target = $region13
  $region12: #{xlm_roberta_module_forward.7} parent=0 // pred_region
    _
  $region13: #{xlm_roberta_module_forward.7} parent=0 // pred_fallthru
    _
  // Predicated region
  $region14: #{xlm_roberta_module_forward.7} parent=0 // pred_check
    _
  $region15: #{xlm_roberta_module_forward.7} parent=0 // pred_check_branch
    %19 = sbr.rel (0) target = $region17
  $region16: #{xlm_roberta_module_forward.7} parent=0 // pred_region
    _
  $region17: #{xlm_roberta_module_forward.7} parent=0 // pred_fallthru
    _
  // Predicated region
  $region18: #{xlm_roberta_module_forward.7} parent=0 // pred_check
    _
  $region19: #{xlm_roberta_module_forward.7} parent=0 // pred_check_branch
    %21 = sbr.rel (0) target = $region21
  $region20: #{xlm_roberta_module_forward.7} parent=0 // pred_region
    _
  $region21: #{xlm_roberta_module_forward.7} parent=0 // pred_fallthru
    _
  // Predicated region
  $region22: #{xlm_roberta_module_forward.7} parent=0 // pred_check
    _
  $region23: #{xlm_roberta_module_forward.7} parent=0 // pred_check_branch
    %23 = sbr.rel (0) target = $region25
  $region24: #{xlm_roberta_module_forward.7} parent=0 // pred_region
    _
  $region25: #{xlm_roberta_module_forward.7} parent=0 // pred_fallthru
    _
  // Predicated region
  $region26: #{xlm_roberta_module_forward.7} parent=0 // pred_check
    _
  $region27: #{xlm_roberta_module_forward.7} parent=0 // pred_check_branch
    %25 = sbr.rel (0) target = $region29
  $region28: #{xlm_roberta_module_forward.7} parent=0 // pred_region
    _
  $region29: #{xlm_roberta_module_forward.7} parent=0 // pred_fallthru
    _
  %v27 = vld [vmem:[%s0] sm:$0xff]
  %v28 = vld [vmem:[%s0 + $0x8] sm:$0xff]
  %v29 = vpack.c.bf16 %v28, %v27
  %v30 = vld [vmem:[%s1] sm:$0xf]
  %v31 = vld [vmem:[%s1 + $0x4] sm:$0xf]
  %v32 = vld [vmem:[%s1 + $0x8] sm:$0xf]
  %v33 = vld [vmem:[%s1 + $0xc] sm:$0xf]
  %v34 = vld [vmem:[%s2] sm:$0x1]
  %v36 = vlaneseq
  %v37 = vshrl.u32 %v36, 7
  %v38 = vsub.s32 0, %v37
  %v39 = vrot.slane %v34, %v38
  %v45 = vunpack.c.l.b16 %v30
  %v46 = vunpack.c.l.b16 %v31
  %v47 = vunpack.c.l.b16 %v32
  %v48 = vunpack.c.l.b16 %v33
  %v49 = vpack.c.b16 %v46, %v45
  %v50 = vpack.c.b16 %v48, %v47
  %vm53 = vcmask 261120
  %v55 = vsel %vm53, %v29, 0
  %57 = vmatprep.subr.bf16.mxu0 0
  %58 = vmatpush1.bf16.msra.mxu0 0
  %59 = vmatprep.subr.bf16.mxu0 0
  %60 = vmatpush1.bf16.msra.mxu0 0
  %61 = vmatprep.subr.bf16.mxu0 0
  %62 = vmatpush1.bf16.msra.mxu0 0
  %63 = vmatprep.subr.bf16.mxu0 0
  %64 = vmatpush1.bf16.msra.mxu0 0
  %65 = vmatprep.subr.bf16.mxu0 0
  %66 = vmatpush1.bf16.msra.mxu0 0
  %67 = vmatprep.subr.bf16.mxu0 0
  %68 = vmatpush1.bf16.msra.mxu0 0
  %69 = vmatprep.subr.bf16.mxu0 0
  %70 = vmatpush1.bf16.msra.mxu0 %v50
  %71 = vmatprep.subr.bf16.mxu0 0
  %72 = vmatpush1.bf16.msra.mxu0 %v49
  %73 = vmatprep.subr.bf16.mxu0 0
  %74 = vmatpush2.bf16.msra.mxu0 0
  %75 = vmatprep.subr.bf16.mxu0 0
  %76 = vmatpush2.bf16.msra.mxu0 0
  %77 = vmatprep.subr.bf16.mxu0 0
  %78 = vmatpush2.bf16.msra.mxu0 0
  %79 = vmatprep.subr.bf16.mxu0 0
  %80 = vmatpush2.bf16.msra.mxu0 0
  %81 = vmatprep.subr.bf16.mxu0 0
  %82 = vmatpush2.bf16.msra.mxu0 0
  %83 = vmatprep.subr.bf16.mxu0 0
  %84 = vmatpush2.bf16.msra.mxu0 0
  %85 = vmatprep.subr.bf16.mxu0 0
  %86 = vmatpush2.bf16.msra.mxu0 0
  %87 = vmatprep.subr.bf16.mxu0 0
  %88 = vmatpush2.bf16.msra.mxu0 0
  %89 = vmatprep.mubr.bf16.mxu0 0
  %90 = vmatmul.mubr.bf16.gmra.mxu0 %v55
  %v91 = vpop.f32.mrf.mxu0
  %v92 = vadd.f32 %v39, %v91
  %v93 = vpop.f32.mrf.mxu0
  %v94 = vpop.f32.mrf.mxu0
  %v95 = vadd.f32 %v39, %v94
  %v96 = vpop.f32.mrf.mxu0
  %97 = vdwg.mxu0
  %v98 = vmul.f32 %v92, 0.5
  %v99 = vmul.f32 %v95, 0.5
  %v100 = vmul.f32 %v92, 0.70710677
  %v101 = vmul.f32 %v95, 0.70710677
  %v102 = verf.f32.pop %v100
  %v103 = verf.f32.pop %v101
  %v104 = vadd.f32 %v102, 1.0
  %v105 = vadd.f32 %v103, 1.0
  %v106 = vmul.f32 %v98, %v104
  %v107 = vmul.f32 %v99, %v105
  %v108 = vpack.c.bf16 %v107, %v106
  %v109 = vld [vmem:[%s3] sm:$0xf]
  %v110 = vld [vmem:[%s3 + $0x4] sm:$0xf]
  %v111 = vld [vmem:[%s3 + $0x8] sm:$0xf]
  %v112 = vld [vmem:[%s3 + $0xc] sm:$0xf]
  %v113 = vld [vmem:[%s3 + $0x10] sm:$0xf]
  %v114 = vld [vmem:[%s3 + $0x14] sm:$0xf]
  %v115 = vld [vmem:[%s3 + $0x18] sm:$0xf]
  %v116 = vld [vmem:[%s3 + $0x1c] sm:$0xf]
  %v117 = vld [vmem:[%s4] sm:$0x1]
  %v119 = vlaneseq
  %v120 = vshrl.u32 %v119, 7
  %v121 = vsub.s32 0, %v120
  %v122 = vrot.slane %v117, %v121
  %v132 = vunpack.c.l.b16 %v109
  %v133 = vunpack.c.l.b16 %v110
  %v134 = vunpack.c.l.b16 %v111
  %v135 = vunpack.c.l.b16 %v112
  %v136 = vunpack.c.l.b16 %v113
  %v137 = vunpack.c.l.b16 %v114
  %v138 = vunpack.c.l.b16 %v115
  %v139 = vunpack.c.l.b16 %v116
  %v140 = vpack.c.b16 %v133, %v132
  %v141 = vpack.c.b16 %v135, %v134
  %v142 = vpack.c.b16 %v137, %v136
  %v143 = vpack.c.b16 %v139, %v138
  %vm148 = vcmask 523264
  %v150 = vsel %vm148, %v108, 0
  %152 = vmatprep.subr.bf16.mxu0 0
  %153 = vmatpush1.bf16.msra.mxu0 0
  %154 = vmatprep.subr.bf16.mxu0 0
  %155 = vmatpush1.bf16.msra.mxu0 0
  %156 = vmatprep.subr.bf16.mxu0 0
  %157 = vmatpush1.bf16.msra.mxu0 0
  %158 = vmatprep.subr.bf16.mxu0 0
  %159 = vmatpush1.bf16.msra.mxu0 0
  %160 = vmatprep.subr.bf16.mxu0 0
  %161 = vmatpush1.bf16.msra.mxu0 %v143
  %162 = vmatprep.subr.bf16.mxu0 0
  %163 = vmatpush1.bf16.msra.mxu0 %v142
  %164 = vmatprep.subr.bf16.mxu0 0
  %165 = vmatpush1.bf16.msra.mxu0 %v141
  %166 = vmatprep.subr.bf16.mxu0 0
  %167 = vmatpush1.bf16.msra.mxu0 %v140
  %168 = vmatprep.subr.bf16.mxu0 0
  %169 = vmatpush2.bf16.msra.mxu0 0
  %170 = vmatprep.subr.bf16.mxu0 0
  %171 = vmatpush2.bf16.msra.mxu0 0
  %172 = vmatprep.subr.bf16.mxu0 0
  %173 = vmatpush2.bf16.msra.mxu0 0
  %174 = vmatprep.subr.bf16.mxu0 0
  %175 = vmatpush2.bf16.msra.mxu0 0
  %176 = vmatprep.subr.bf16.mxu0 0
  %177 = vmatpush2.bf16.msra.mxu0 0
  %178 = vmatprep.subr.bf16.mxu0 0
  %179 = vmatpush2.bf16.msra.mxu0 0
  %180 = vmatprep.subr.bf16.mxu0 0
  %181 = vmatpush2.bf16.msra.mxu0 0
  %182 = vmatprep.subr.bf16.mxu0 0
  %183 = vmatpush2.bf16.msra.mxu0 0
  %184 = vmatprep.mubr.bf16.mxu0 0
  %185 = vmatmul.mubr.bf16.gmra.mxu0 %v150
  %v186 = vpop.f32.mrf.mxu0
  %v187 = vadd.f32 %v122, %v186
  %v188 = vpop.f32.mrf.mxu0
  %v189 = vpop.f32.mrf.mxu0
  %v190 = vadd.f32 %v122, %v189
  %v191 = vpop.f32.mrf.mxu0
  %192 = vdwg.mxu0
  %v193 = vadd.f32 %v187, %v27
  %v194 = vadd.f32 %v190, %v28
  %v195 = vsel %vm53, %v193, 0.0
  %196 = vadd.xlane.f32.xlu0 %v195
  %v197 = vpop.xlane.xlu0 %196
  %v198 = vsel %vm53, %v194, 0.0
  %199 = vadd.xlane.f32.xlu0 %v198
  %v200 = vpop.xlane.xlu0 %199
  %v201 = vrcp.pop 32.0
  %v202 = vmul.f32 %v197, %v201
  %v203 = vmul.f32 %v200, %v201
  %v204 = vsub.f32 %v193, %v202
  %v205 = vsub.f32 %v194, %v203
  %v206 = vmul.f32 %v204, %v204
  %v207 = vmul.f32 %v205, %v205
  %v208 = vsel %vm53, %v206, 0.0
  %209 = vadd.xlane.f32.xlu0 %v208
  %v210 = vpop.xlane.xlu0 %209
  %v211 = vsel %vm53, %v207, 0.0
  %212 = vadd.xlane.f32.xlu0 %v211
  %v213 = vpop.xlane.xlu0 %212
  %v214 = vmul.f32 %v210, %v201
  %v215 = vmul.f32 %v213, %v201
  %v216 = vadd.f32 %v214, 1e-05
  %v217 = vadd.f32 %v215, 1e-05
  %v218 = vrsqrt.pop %v216
  %v219 = vrsqrt.pop %v217
  %v220 = vmul.f32 %v204, %v218
  %v221 = vmul.f32 %v205, %v219
  %v222 = vld [vmem:[%s5] sm:$0x1]
  %v224 = vlaneseq
  %v225 = vshrl.u32 %v224, 7
  %v226 = vsub.s32 0, %v225
  %v227 = vrot.slane %v222, %v226
  %v229 = vmul.f32 %v220, %v227
  %v230 = vmul.f32 %v221, %v227
  %v231 = vld [vmem:[%s6] sm:$0x1]
  %v233 = vlaneseq
  %v234 = vshrl.u32 %v233, 7
  %v235 = vsub.s32 0, %v234
  %v236 = vrot.slane %v231, %v235
  %v238 = vadd.f32 %v229, %v236
  %v239 = vadd.f32 %v230, %v236
  %240 = vst.msk [vmem:[%s7] sm:$0xff] %vm53, %v238
  %241 = vst.msk [vmem:[%s7 + $0x8] sm:$0xff] %vm53, %v239
  // Predicated region
  $region30: #{xlm_roberta_module_forward.7} parent=0 // pred_check
    _
  $region31: #{xlm_roberta_module_forward.7} parent=0 // pred_check_branch
    %243 = sbr.rel (0) target = $region33
  $region32: #{xlm_roberta_module_forward.7} parent=0 // pred_region
    _
  $region33: #{xlm_roberta_module_forward.7} parent=0 // pred_fallthru
    _
  // Predicated region
  $region34: #{xlm_roberta_module_forward.7} parent=0 // pred_check
    _
  $region35: #{xlm_roberta_module_forward.7} parent=0 // pred_check_branch
    %245 = sbr.rel (0) target = $region37
  $region36: #{xlm_roberta_module_forward.7} parent=0 // pred_region
    _
  $region37: #{xlm_roberta_module_forward.7} parent=0 // pred_fallthru
    _

// kernel: xlm_roberta_module_forward.6
$region0: #{xlm_roberta_module_forward.6}
  #allocation0 [shape = 'u32[]', space=smem, size = 0x4, offset = 0x4, fixed_abs, tag = 'smem constant byte address 0x4 - core index']
  #allocation1 [shape = 'u32[144,128]{1,0:T(1,128)}', space=vmem, size = 0x12000, scoped, tag = 'internal scratch']
  #allocation2 [shape = 'f32[8,32]{1,0:T(8,128)}', space=vmem, size = 0x1000, scoped, tag = 'scratch operand']
  %s0 = inlined_call_operand.vmem [shape: f32[2,8,32], index: 0, kind: input, shape index: {}]
  %s1 = inlined_call_operand.vmem [shape: bf16[32,96], index: 1, kind: input, shape index: {}]
  %s2 = inlined_call_operand.vmem [shape: f32[1,96], index: 2, kind: input, shape index: {}]
  %s3 = inlined_call_operand.vmem [shape: f32[2,1,8], index: 3, kind: input, shape index: {}]
  %s4 = inlined_call_operand.vmem [shape: bf16[32,32], index: 4, kind: input, shape index: {}]
  %s5 = inlined_call_operand.vmem [shape: f32[1,32], index: 5, kind: input, shape index: {}]
  %s6 = inlined_call_operand.vmem [shape: f32[1,32], index: 6, kind: input, shape index: {}]
  %s7 = inlined_call_operand.vmem [shape: f32[1,32], index: 7, kind: input, shape index: {}]
  %s8 = inlined_call_operand.vmem [shape: f32[2,8,32], index: 8, kind: output, shape index: {}]
  %s9 = sld [smem:[#allocation0]]
  $region65: #{xlm_roberta_module_forward.6} parent=0
    _
  %s11 = ssub.s32 1, %s9
  %s12 = scalar_select 0, %s11, %s9
  loop: start=0, step=1, limit=4
  $region2: #{xlm_roberta_module_forward.6} parent=0 // loop_pre_header
    _
  $region3: #{xlm_roberta_module_forward.6} parent=0 // loop_header
    %s14 = sphi 0, %s18
    %p15 = scmp.ge.s32.totalorder %s14, 4
    %s24 = sphi 0, %s26
    %s27 = sphi 0, %s24
    %s28 = sphi 0, %s27
    %s44 = sphi 0, %s28
    %s48 = sphi 0, %s48
    %s50 = sphi 0, %s48
    %s51 = sphi 0, %s50
    %s65 = sphi 0, %s51
    %s69 = sphi 0, %s69
    %s71 = sphi 0, %s69
    %s72 = sphi 0, %s71
    %s86 = sphi 0, %s72
    %s92 = sphi 0, %s94
    %s95 = sphi 0, %s92
    %s96 = sphi 0, %s95
    %s112 = sphi 0, %s96
    %s116 = sphi 0, %s116
    %s118 = sphi 0, %s116
    %s119 = sphi 0, %s118
    %s133 = sphi 0, %s119
    %s137 = sphi 0, %s137
    %s139 = sphi 0, %s137
    %s140 = sphi 0, %s139
    %s154 = sphi 0, %s140
    %s158 = sphi 0, %s158
    %s160 = sphi 0, %s158
    %s161 = sphi 0, %s160
    %s175 = sphi 0, %s161
    %s179 = sphi 0, %s179
    %s181 = sphi 0, %s179
    %s182 = sphi 0, %s181
    %s196 = sphi 0, %s182
    %s202 = sphi 0, %s204
    %s205 = sphi 0, %s202
    %s206 = sphi 0, %s205
    %s222 = sphi 0, %s206
  $region4: #{xlm_roberta_module_forward.6} parent=0 // loop_header_branch
    %17 = sbr.rel (%p15) target = $region8
  $region5: #{xlm_roberta_module_forward.6} parent=0 // loop_body
    %s19 = ssub.s32 %s14, 1
    %s20 = ssub.s32 %s14, 2
    %s21 = sadd.s32 %s14, 1
    %s22 = ssub.s32 %s14, %s21
    %p23 = scmp.eq.s32.totalorder %s22, 0
    %s25 = sadd.s32 %s24, 1
    %s26 = scalar_select %p23, %s24, %s25
    %p29 = pneg %p23
    %p30 = scmp.eq.s32.totalorder %s14, 1
    %p31 = por %p29, %p30
    %p32 = scmp.ne.s32.totalorder %s24, %s27
    %p33 = scmp.eq.s32.totalorder %s14, 0
    %p34 = por %p32, %p33
    %p35 = scmp.ne.s32.totalorder %s24, %s27
    %p36 = scmp.eq.s32.totalorder %s19, 1
    %p37 = por %p35, %p36
    %p38 = scmp.ne.s32.totalorder %s27, %s28
    %p39 = scmp.eq.s32.totalorder %s19, 0
    %p40 = por %p38, %p39
    %p41 = scmp.ne.s32.totalorder %s27, %s28
    %p42 = scmp.eq.s32.totalorder %s20, 1
    %p43 = por %p41, %p42
    %p45 = scmp.ne.s32.totalorder %s28, %s44
    %p46 = scmp.eq.s32.totalorder %s20, 0
    %p47 = por %p45, %p46
    %s49 = sadd.s32 %s48, 1
    %p52 = scmp.eq.s32.totalorder %s14, 1
    %p53 = scmp.ne.s32.totalorder %s48, %s50
    %p54 = scmp.eq.s32.totalorder %s14, 0
    %p55 = por %p53, %p54
    %p56 = scmp.ne.s32.totalorder %s48, %s50
    %p57 = scmp.eq.s32.totalorder %s19, 1
    %p58 = por %p56, %p57
    %p59 = scmp.ne.s32.totalorder %s50, %s51
    %p60 = scmp.eq.s32.totalorder %s19, 0
    %p61 = por %p59, %p60
    %p62 = scmp.ne.s32.totalorder %s50, %s51
    %p63 = scmp.eq.s32.totalorder %s20, 1
    %p64 = por %p62, %p63
    %p66 = scmp.ne.s32.totalorder %s51, %s65
    %p67 = scmp.eq.s32.totalorder %s20, 0
    %p68 = por %p66, %p67
    %s70 = sadd.s32 %s69, 1
    %p73 = scmp.eq.s32.totalorder %s14, 1
    %p74 = scmp.ne.s32.totalorder %s69, %s71
    %p75 = scmp.eq.s32.totalorder %s14, 0
    %p76 = por %p74, %p75
    %p77 = scmp.ne.s32.totalorder %s69, %s71
    %p78 = scmp.eq.s32.totalorder %s19, 1
    %p79 = por %p77, %p78
    %p80 = scmp.ne.s32.totalorder %s71, %s72
    %p81 = scmp.eq.s32.totalorder %s19, 0
    %p82 = por %p80, %p81
    %p83 = scmp.ne.s32.totalorder %s71, %s72
    %p84 = scmp.eq.s32.totalorder %s20, 1
    %p85 = por %p83, %p84
    %p87 = scmp.ne.s32.totalorder %s72, %s86
    %p88 = scmp.eq.s32.totalorder %s20, 0
    %p89 = por %p87, %p88
    %s90 = ssub.s32 %s14, %s21
    %p91 = scmp.eq.s32.totalorder %s90, 0
    %s93 = sadd.s32 %s92, 1
    %s94 = scalar_select %p91, %s92, %s93
    %p97 = pneg %p91
    %p98 = scmp.eq.s32.totalorder %s14, 1
    %p99 = por %p97, %p98
    %p100 = scmp.ne.s32.totalorder %s92, %s95
    %p101 = scmp.eq.s32.totalorder %s14, 0
    %p102 = por %p100, %p101
    %p103 = scmp.ne.s32.totalorder %s92, %s95
    %p104 = scmp.eq.s32.totalorder %s19, 1
    %p105 = por %p103, %p104
    %p106 = scmp.ne.s32.totalorder %s95, %s96
    %p107 = scmp.eq.s32.totalorder %s19, 0
    %p108 = por %p106, %p107
    %p109 = scmp.ne.s32.totalorder %s95, %s96
    %p110 = scmp.eq.s32.totalorder %s20, 1
    %p111 = por %p109, %p110
    %p113 = scmp.ne.s32.totalorder %s96, %s112
    %p114 = scmp.eq.s32.totalorder %s20, 0
    %p115 = por %p113, %p114
    %s117 = sadd.s32 %s116, 1
    %p120 = scmp.eq.s32.totalorder %s14, 1
    %p121 = scmp.ne.s32.totalorder %s116, %s118
    %p122 = scmp.eq.s32.totalorder %s14, 0
    %p123 = por %p121, %p122
    %p124 = scmp.ne.s32.totalorder %s116, %s118
    %p125 = scmp.eq.s32.totalorder %s19, 1
    %p126 = por %p124, %p125
    %p127 = scmp.ne.s32.totalorder %s118, %s119
    %p128 = scmp.eq.s32.totalorder %s19, 0
    %p129 = por %p127, %p128
    %p130 = scmp.ne.s32.totalorder %s118, %s119
    %p131 = scmp.eq.s32.totalorder %s20, 1
    %p132 = por %p130, %p131
    %p134 = scmp.ne.s32.totalorder %s119, %s133
    %p135 = scmp.eq.s32.totalorder %s20, 0
    %p136 = por %p134, %p135
    %s138 = sadd.s32 %s137, 1
    %p141 = scmp.eq.s32.totalorder %s14, 1
    %p142 = scmp.ne.s32.totalorder %s137, %s139
    %p143 = scmp.eq.s32.totalorder %s14, 0
    %p144 = por %p142, %p143
    %p145 = scmp.ne.s32.totalorder %s137, %s139
    %p146 = scmp.eq.s32.totalorder %s19, 1
    %p147 = por %p145, %p146
    %p148 = scmp.ne.s32.totalorder %s139, %s140
    %p149 = scmp.eq.s32.totalorder %s19, 0
    %p150 = por %p148, %p149
    %p151 = scmp.ne.s32.totalorder %s139, %s140
    %p152 = scmp.eq.s32.totalorder %s20, 1
    %p153 = por %p151, %p152
    %p155 = scmp.ne.s32.totalorder %s140, %s154
    %p156 = scmp.eq.s32.totalorder %s20, 0
    %p157 = por %p155, %p156
    %s159 = sadd.s32 %s158, 1
    %p162 = scmp.eq.s32.totalorder %s14, 1
    %p163 = scmp.ne.s32.totalorder %s158, %s160
    %p164 = scmp.eq.s32.totalorder %s14, 0
    %p165 = por %p163, %p164
    %p166 = scmp.ne.s32.totalorder %s158, %s160
    %p167 = scmp.eq.s32.totalorder %s19, 1
    %p168 = por %p166, %p167
    %p169 = scmp.ne.s32.totalorder %s160, %s161
    %p170 = scmp.eq.s32.totalorder %s19, 0
    %p171 = por %p169, %p170
    %p172 = scmp.ne.s32.totalorder %s160, %s161
    %p173 = scmp.eq.s32.totalorder %s20, 1
    %p174 = por %p172, %p173
    %p176 = scmp.ne.s32.totalorder %s161, %s175
    %p177 = scmp.eq.s32.totalorder %s20, 0
    %p178 = por %p176, %p177
    %s180 = sadd.s32 %s179, 1
    %p183 = scmp.eq.s32.totalorder %s14, 1
    %p184 = scmp.ne.s32.totalorder %s179, %s181
    %p185 = scmp.eq.s32.totalorder %s14, 0
    %p186 = por %p184, %p185
    %p187 = scmp.ne.s32.totalorder %s179, %s181
    %p188 = scmp.eq.s32.totalorder %s19, 1
    %p189 = por %p187, %p188
    %p190 = scmp.ne.s32.totalorder %s181, %s182
    %p191 = scmp.eq.s32.totalorder %s19, 0
    %p192 = por %p190, %p191
    %p193 = scmp.ne.s32.totalorder %s181, %s182
    %p194 = scmp.eq.s32.totalorder %s20, 1
    %p195 = por %p193, %p194
    %p197 = scmp.ne.s32.totalorder %s182, %s196
    %p198 = scmp.eq.s32.totalorder %s20, 0
    %p199 = por %p197, %p198
    %s200 = ssub.s32 %s14, %s21
    %p201 = scmp.eq.s32.totalorder %s200, 0
    %s203 = sadd.s32 %s202, 1
    %s204 = scalar_select %p201, %s202, %s203
    %p207 = pneg %p201
    %p208 = scmp.eq.s32.totalorder %s14, 1
    %p209 = por %p207, %p208
    %p210 = scmp.ne.s32.totalorder %s202, %s205
    %p211 = scmp.eq.s32.totalorder %s14, 0
    %p212 = por %p210, %p211
    %p213 = scmp.ne.s32.totalorder %s202, %s205
    %p214 = scmp.eq.s32.totalorder %s19, 1
    %p215 = por %p213, %p214
    %p216 = scmp.ne.s32.totalorder %s205, %s206
    %p217 = scmp.eq.s32.totalorder %s19, 0
    %p218 = por %p216, %p217
    %p219 = scmp.ne.s32.totalorder %s205, %s206
    %p220 = scmp.eq.s32.totalorder %s20, 1
    %p221 = por %p219, %p220
    %p223 = scmp.ne.s32.totalorder %s206, %s222
    %p224 = scmp.eq.s32.totalorder %s20, 0
    %p225 = por %p223, %p224
    %p226 = scmp.le.s32.totalorder 1, %s14
    %p227 = scmp.lt.s32.totalorder %s14, 3
    %p228 = pnand %p226, %p227
    %p229 = pneg %p228
    // Predicated region
    $region9: #{xlm_roberta_module_forward.6} parent=5 // pred_check
      _
    $region10: #{xlm_roberta_module_forward.6} parent=5 // pred_check_branch
      %231 = sbr.rel (%p228) target = $region12
    $region11: #{xlm_roberta_module_forward.6} parent=5 // pred_region
      %s232 = ssub.s32 %s14, 1
      // Predicated region
      $region13: #{xlm_roberta_module_forward.6} parent=11 // pred_check
        %p233 = pneg %p61
      $region14: #{xlm_roberta_module_forward.6} parent=11 // pred_check_branch
        %235 = sbr.rel (%p233) target = $region16
      $region15: #{xlm_roberta_module_forward.6} parent=11 // pred_region
        _
      $region16: #{xlm_roberta_module_forward.6} parent=11 // pred_fallthru
        _
      // Predicated region
      $region17: #{xlm_roberta_module_forward.6} parent=11 // pred_check
        %p236 = pneg %p82
      $region18: #{xlm_roberta_module_forward.6} parent=11 // pred_check_branch
        %238 = sbr.rel (%p236) target = $region20
      $region19: #{xlm_roberta_module_forward.6} parent=11 // pred_region
        _
      $region20: #{xlm_roberta_module_forward.6} parent=11 // pred_fallthru
        _
      // Predicated region
      $region21: #{xlm_roberta_module_forward.6} parent=11 // pred_check
        %p239 = pneg %p129
      $region22: #{xlm_roberta_module_forward.6} parent=11 // pred_check_branch
        %241 = sbr.rel (%p239) target = $region24
      $region23: #{xlm_roberta_module_forward.6} parent=11 // pred_region
        _
      $region24: #{xlm_roberta_module_forward.6} parent=11 // pred_fallthru
        _
      // Predicated region
      $region25: #{xlm_roberta_module_forward.6} parent=11 // pred_check
        %p242 = pneg %p150
      $region26: #{xlm_roberta_module_forward.6} parent=11 // pred_check_branch
        %244 = sbr.rel (%p242) target = $region28
      $region27: #{xlm_roberta_module_forward.6} parent=11 // pred_region
        _
      $region28: #{xlm_roberta_module_forward.6} parent=11 // pred_fallthru
        _
      // Predicated region
      $region29: #{xlm_roberta_module_forward.6} parent=11 // pred_check
        %p245 = pneg %p171
      $region30: #{xlm_roberta_module_forward.6} parent=11 // pred_check_branch
        %247 = sbr.rel (%p245) target = $region32
      $region31: #{xlm_roberta_module_forward.6} parent=11 // pred_region
        _
      $region32: #{xlm_roberta_module_forward.6} parent=11 // pred_fallthru
        _
      // Predicated region
      $region33: #{xlm_roberta_module_forward.6} parent=11 // pred_check
        %p248 = pneg %p192
      $region34: #{xlm_roberta_module_forward.6} parent=11 // pred_check_branch
        %250 = sbr.rel (%p248) target = $region36
      $region35: #{xlm_roberta_module_forward.6} parent=11 // pred_region
        _
      $region36: #{xlm_roberta_module_forward.6} parent=11 // pred_fallthru
        _
    $region12: #{xlm_roberta_module_forward.6} parent=5 // pred_fallthru
      _
    %p251 = scmp.lt.s32.totalorder %s14, 2
    // Predicated region
    $region37: #{xlm_roberta_module_forward.6} parent=5 // pred_check
      %p252 = pneg %p251
    $region38: #{xlm_roberta_module_forward.6} parent=5 // pred_check_branch
      %254 = sbr.rel (%p252) target = $region40
    $region39: #{xlm_roberta_module_forward.6} parent=5 // pred_region
      // Predicated region
      $region41: #{xlm_roberta_module_forward.6} parent=39 // pred_check
        %p255 = pneg %p34
      $region42: #{xlm_roberta_module_forward.6} parent=39 // pred_check_branch
        %257 = sbr.rel (%p255) target = $region44
      $region43: #{xlm_roberta_module_forward.6} parent=39 // pred_region
        %p258 = scmp.lt.s32.totalorder %s14, 1
        %s259 = scalar_select %p258, %s14, 1
        %s260 = smul.addr %s259, 8
        %s261 = scalar_lea.vmem %s0, %s260
      $region44: #{xlm_roberta_module_forward.6} parent=39 // pred_fallthru
        _
      // Predicated region
      $region45: #{xlm_roberta_module_forward.6} parent=39 // pred_check
        %p262 = pneg %p102
      $region46: #{xlm_roberta_module_forward.6} parent=39 // pred_check_branch
        %264 = sbr.rel (%p262) target = $region48
      $region47: #{xlm_roberta_module_forward.6} parent=39 // pred_region
        %p265 = scmp.lt.s32.totalorder %s14, 1
        %s266 = scalar_select %p265, %s14, 1
        %s267 = scalar_lea.vmem %s3, %s266
      $region48: #{xlm_roberta_module_forward.6} parent=39 // pred_fallthru
        _
    $region40: #{xlm_roberta_module_forward.6} parent=5 // pred_fallthru
      _
    %p268 = scmp.le.s32.totalorder 1, %s14
    %p269 = scmp.lt.s32.totalorder %s14, 3
    %p270 = pnand %p268, %p269
    %p271 = pneg %p270
    // Predicated region
    $region49: #{xlm_roberta_module_forward.6} parent=5 // pred_check
      _
    $region50: #{xlm_roberta_module_forward.6} parent=5 // pred_check_branch
      %273 = sbr.rel (%p270) target = $region52
    $region51: #{xlm_roberta_module_forward.6} parent=5 // pred_region
      %s274 = ssub.s32 %s14, 1
      %p275 = scmp.lt.s32.totalorder %s19, 1
      %s276 = scalar_select %p275, %s19, 1
      %s277 = smul.addr %s276, 8
      %s278 = scalar_lea.vmem %s0, %s277
      %p279 = pneg %p40
      %p280 = pneg %p37
      %p281 = pneg %p61
      %p282 = pneg %p58
      %p283 = pneg %p82
      %p284 = pneg %p79
      %p285 = scmp.lt.s32.totalorder %s19, 1
      %s286 = scalar_select %p285, %s19, 1
      %s287 = scalar_lea.vmem %s3, %s286
      %p288 = pneg %p108
      %p289 = pneg %p105
      %p290 = pneg %p129
      %p291 = pneg %p126
      %p292 = pneg %p150
      %p293 = pneg %p147
      %p294 = pneg %p171
      %p295 = pneg %p168
      %p296 = pneg %p192
      %p297 = pneg %p189
      %p298 = pneg %p218
      %p299 = pneg %p215
      %p300 = scmp.lt.s32.totalorder %s19, 1
      %s301 = scalar_select %p300, %s19, 1
      %s302 = smul.addr %s301, 8
      %s303 = scalar_lea.vmem %s8, %s302
      %p304 = scmp.lt.s32.totalorder %s19, 1
      %s305 = scalar_select %p304, %s19, 1
      %s306 = smul.addr %s305, 8
      %s307 = scalar_lea.vmem %s0, %s306
      %p308 = scmp.lt.s32.totalorder %s19, 1
      %s309 = scalar_select %p308, %s19, 1
      %s310 = scalar_lea.vmem %s3, %s309
      %p311 = scmp.lt.s32.totalorder %s19, 1
      %s312 = scalar_select %p311, %s19, 1
      %s313 = smul.addr %s312, 8
      %s314 = scalar_lea.vmem %s8, %s313
      %v316 = vld [vmem:[%s307] sm:$0xff]
      %v317 = vld [vmem:[%s310] sm:$0x1]
      %v318 = vpack.c.bf16 %v316, %v316
      %v319 = vld [vmem:[%s1] sm:$0xf]
      %v320 = vld [vmem:[%s1 + $0x4] sm:$0xf]
      %v321 = vld [vmem:[%s1 + $0x8] sm:$0xf]
      %v322 = vld [vmem:[%s1 + $0xc] sm:$0xf]
      %v323 = vld [vmem:[%s2] sm:$0x1]
      %v325 = vlaneseq
      %v326 = vshrl.u32 %v325, 7
      %v327 = vsub.s32 0, %v326
      %v328 = vrot.slane %v323, %v327
      %v334 = vunpack.c.l.b16 %v319
      %v335 = vunpack.c.l.b16 %v320
      %v336 = vunpack.c.l.b16 %v321
      %v337 = vunpack.c.l.b16 %v322
      %v338 = vpack.c.b16 %v335, %v334
      %v339 = vpack.c.b16 %v337, %v336
      %vm342 = vcmask 261120
      %v344 = vsel %vm342, %v318, 0
      %346 = vmatprep.subr.bf16.mxu0 0
      %347 = vmatpush1.bf16.msra.mxu0 0
      %348 = vmatprep.subr.bf16.mxu0 0
      %349 = vmatpush1.bf16.msra.mxu0 0
      %350 = vmatprep.subr.bf16.mxu0 0
      %351 = vmatpush1.bf16.msra.mxu0 0
      %352 = vmatprep.subr.bf16.mxu0 0
      %353 = vmatpush1.bf16.msra.mxu0 0
      %354 = vmatprep.subr.bf16.mxu0 0
      %355 = vmatpush1.bf16.msra.mxu0 0
      %356 = vmatprep.subr.bf16.mxu0 0
      %357 = vmatpush1.bf16.msra.mxu0 0
      %358 = vmatprep.subr.bf16.mxu0 0
      %359 = vmatpush1.bf16.msra.mxu0 %v339
      %360 = vmatprep.subr.bf16.mxu0 0
      %361 = vmatpush1.bf16.msra.mxu0 %v338
      %362 = vmatprep.subr.bf16.mxu0 0
      %363 = vmatpush2.bf16.msra.mxu0 0
      %364 = vmatprep.subr.bf16.mxu0 0
      %365 = vmatpush2.bf16.msra.mxu0 0
      %366 = vmatprep.subr.bf16.mxu0 0
      %367 = vmatpush2.bf16.msra.mxu0 0
      %368 = vmatprep.subr.bf16.mxu0 0
      %369 = vmatpush2.bf16.msra.mxu0 0
      %370 = vmatprep.subr.bf16.mxu0 0
      %371 = vmatpush2.bf16.msra.mxu0 0
      %372 = vmatprep.subr.bf16.mxu0 0
      %373 = vmatpush2.bf16.msra.mxu0 0
      %374 = vmatprep.subr.bf16.mxu0 0
      %375 = vmatpush2.bf16.msra.mxu0 0
      %376 = vmatprep.subr.bf16.mxu0 0
      %377 = vmatpush2.bf16.msra.mxu0 0
      %378 = vmatprep.mubr.bf16.mxu0 0
      %379 = vmatmul.mubr.bf16.gmra.mxu0 %v344
      %v380 = vpop.f32.mrf.mxu0
      %v381 = vadd.f32 %v328, %v380
      %v382 = vpop.f32.mrf.mxu0
      %v383 = vpop.f32.mrf.mxu0
      %v384 = vpop.f32.mrf.mxu0
      %385 = vdwg.mxu0
      %v386 = vmul.f32 %v381, 0.35355338
      %v387 = vpack.c.bf16 %v386, %v386
      %v388 = vpack.c.bf16 %v381, %v381
      %v390 = vlaneseq
      %v391 = vshrl.u32 %v390, 7
      %v392 = vsub.s32 0, %v391
      %v393 = vrot.slane %v317, %v392
      %396 = vrot.lane.b32.xlu0 %v388, 96
      %v397 = vpop.permute.xlu0 %396
      %vm398 = vcmask 64512
      %v400 = vsel %vm398, %v387, 0
      %v403 = vsel %vm398, %v397, 0
      %405 = vmatprep.subr.bf16.mxu0 0
      %406 = vmatpush1.bf16.xpose.msra.mxu0 0
      %407 = vmatprep.subr.bf16.mxu0 0
      %408 = vmatpush1.bf16.xpose.msra.mxu0 0
      %409 = vmatprep.subr.bf16.mxu0 0
      %410 = vmatpush1.bf16.xpose.msra.mxu0 0
      %411 = vmatprep.subr.bf16.mxu0 0
      %412 = vmatpush1.bf16.xpose.msra.mxu0 0
      %413 = vmatprep.subr.bf16.mxu0 0
      %414 = vmatpush1.bf16.xpose.msra.mxu0 0
      %415 = vmatprep.subr.bf16.mxu0 0
      %416 = vmatpush1.bf16.xpose.msra.mxu0 0
      %417 = vmatprep.subr.bf16.mxu0 0
      %418 = vmatpush1.bf16.xpose.msra.mxu0 0
      %419 = vmatprep.subr.bf16.mxu0 0
      %420 = vmatpush1.bf16.xpose.msra.mxu0 %v403
      %421 = vmatprep.subr.bf16.mxu0 0
      %422 = vmatpush2.bf16.xpose.msra.mxu0 0
      %423 = vmatprep.subr.bf16.mxu0 0
      %424 = vmatpush2.bf16.xpose.msra.mxu0 0
      %425 = vmatprep.subr.bf16.mxu0 0
      %426 = vmatpush2.bf16.xpose.msra.mxu0 0
      %427 = vmatprep.subr.bf16.mxu0 0
      %428 = vmatpush2.bf16.xpose.msra.mxu0 0
      %429 = vmatprep.subr.bf16.mxu0 0
      %430 = vmatpush2.bf16.xpose.msra.mxu0 0
      %431 = vmatprep.subr.bf16.mxu0 0
      %432 = vmatpush2.bf16.xpose.msra.mxu0 0
      %433 = vmatprep.subr.bf16.mxu0 0
      %434 = vmatpush2.bf16.xpose.msra.mxu0 0
      %435 = vmatprep.subr.bf16.mxu0 0
      %436 = vmatpush2.bf16.xpose.msra.mxu0 0
      %437 = vmatprep.mubr.bf16.mxu0 0
      %438 = vmatmul.mubr.bf16.gmra.mxu0 %v400
      %v439 = vpop.f32.mrf.mxu0
      %v440 = vadd.f32 %v393, %v439
      %v441 = vpop.f32.mrf.mxu0
      %v442 = vpop.f32.mrf.mxu0
      %v443 = vpop.f32.mrf.mxu0
      %444 = vdwg.mxu0
      %v445 = vsel %vm398, %v440, -inf
      %446 = vmax.xlane.f32.xlu0 %v445
      %v447 = vpop.xlane.xlu0 %446
      %v448 = vsub.f32 %v440, %v447
      %v449 = vmul.f32 %v448, 1.442695
      %v450 = vpow.pop %v449
      %v451 = vsel %vm398, %v450, 0.0
      %452 = vadd.xlane.f32.xlu0 %v451
      %v453 = vpop.xlane.xlu0 %452
      %v454 = vrcp.pop %v453
      %v455 = vmul.f32 %v450, %v454
      %v456 = vpack.c.bf16 %v455, %v455
      %457 = vrot.lane.b32.xlu0 %v388, 64
      %v458 = vpop.permute.xlu0 %457
      %v460 = vsel %vm398, %v456, 0
      %vm462 = vcmask 1043456
      %v464 = vsel %vm462, %v458, 0
      %466 = vmatprep.subr.bf16.mxu0 0
      %467 = vmatpush1.bf16.msra.mxu0 0
      %468 = vmatprep.subr.bf16.mxu0 0
      %469 = vmatpush1.bf16.msra.mxu0 0
      %470 = vmatprep.subr.bf16.mxu0 0
      %471 = vmatpush1.bf16.msra.mxu0 0
      %472 = vmatprep.subr.bf16.mxu0 0
      %473 = vmatpush1.bf16.msra.mxu0 0
      %474 = vmatprep.subr.bf16.mxu0 0
      %475 = vmatpush1.bf16.msra.mxu0 0
      %476 = vmatprep.subr.bf16.mxu0 0
      %477 = vmatpush1.bf16.msra.mxu0 0
      %478 = vmatprep.subr.bf16.mxu0 0
      %479 = vmatpush1.bf16.msra.mxu0 0
      %480 = vmatprep.subr.bf16.mxu0 0
      %481 = vmatpush1.bf16.msra.mxu0 %v464
      %482 = vmatprep.subr.bf16.mxu0 0
      %483 = vmatpush2.bf16.msra.mxu0 0
      %484 = vmatprep.subr.bf16.mxu0 0
      %485 = vmatpush2.bf16.msra.mxu0 0
      %486 = vmatprep.subr.bf16.mxu0 0
      %487 = vmatpush2.bf16.msra.mxu0 0
      %488 = vmatprep.subr.bf16.mxu0 0
      %489 = vmatpush2.bf16.msra.mxu0 0
      %490 = vmatprep.subr.bf16.mxu0 0
      %491 = vmatpush2.bf16.msra.mxu0 0
      %492 = vmatprep.subr.bf16.mxu0 0
      %493 = vmatpush2.bf16.msra.mxu0 0
      %494 = vmatprep.subr.bf16.mxu0 0
      %495 = vmatpush2.bf16.msra.mxu0 0
      %496 = vmatprep.subr.bf16.mxu0 0
      %497 = vmatpush2.bf16.msra.mxu0 0
      %498 = vmatprep.mubr.bf16.mxu0 0
      %499 = vmatmul.mubr.bf16.gmra.mxu0 %v460
      %v500 = vpop.f32.mrf.mxu0
      %v501 = vadd.f32 0.0, %v500
      %v502 = vpop.f32.mrf.mxu0
      %v503 = vpop.f32.mrf.mxu0
      %v504 = vpop.f32.mrf.mxu0
      %505 = vdwg.mxu0
      %506 = vst.msk [vmem:[#allocation2] sm:$0xff] %vm398, %v501
      %508 = vrot.lane.b32.xlu0 %v387, 120
      %v509 = vpop.permute.xlu0 %508
      %510 = vrot.lane.b32.xlu0 %v388, 88
      %v511 = vpop.permute.xlu0 %510
      %v513 = vsel %vm398, %v509, 0
      %v516 = vsel %vm398, %v511, 0
      %518 = vmatprep.subr.bf16.mxu0 0
      %519 = vmatpush1.bf16.xpose.msra.mxu0 0
      %520 = vmatprep.subr.bf16.mxu0 0
      %521 = vmatpush1.bf16.xpose.msra.mxu0 0
      %522 = vmatprep.subr.bf16.mxu0 0
      %523 = vmatpush1.bf16.xpose.msra.mxu0 0
      %524 = vmatprep.subr.bf16.mxu0 0
      %525 = vmatpush1.bf16.xpose.msra.mxu0 0
      %526 = vmatprep.subr.bf16.mxu0 0
      %527 = vmatpush1.bf16.xpose.msra.mxu0 0
      %528 = vmatprep.subr.bf16.mxu0 0
      %529 = vmatpush1.bf16.xpose.msra.mxu0 0
      %530 = vmatprep.subr.bf16.mxu0 0
      %531 = vmatpush1.bf16.xpose.msra.mxu0 0
      %532 = vmatprep.subr.bf16.mxu0 0
      %533 = vmatpush1.bf16.xpose.msra.mxu0 %v516
      %534 = vmatprep.subr.bf16.mxu0 0
      %535 = vmatpush2.bf16.xpose.msra.mxu0 0
      %536 = vmatprep.subr.bf16.mxu0 0
      %537 = vmatpush2.bf16.xpose.msra.mxu0 0
      %538 = vmatprep.subr.bf16.mxu0 0
      %539 = vmatpush2.bf16.xpose.msra.mxu0 0
      %540 = vmatprep.subr.bf16.mxu0 0
      %541 = vmatpush2.bf16.xpose.msra.mxu0 0
      %542 = vmatprep.subr.bf16.mxu0 0
      %543 = vmatpush2.bf16.xpose.msra.mxu0 0
      %544 = vmatprep.subr.bf16.mxu0 0
      %545 = vmatpush2.bf16.xpose.msra.mxu0 0
      %546 = vmatprep.subr.bf16.mxu0 0
      %547 = vmatpush2.bf16.xpose.msra.mxu0 0
      %548 = vmatprep.subr.bf16.mxu0 0
      %549 = vmatpush2.bf16.xpose.msra.mxu0 0
      %550 = vmatprep.mubr.bf16.mxu0 0
      %551 = vmatmul.mubr.bf16.gmra.mxu0 %v513
      %v552 = vpop.f32.mrf.mxu0
      %v553 = vadd.f32 %v393, %v552
      %v554 = vpop.f32.mrf.mxu0
      %v555 = vpop.f32.mrf.mxu0
      %v556 = vpop.f32.mrf.mxu0
      %557 = vdwg.mxu0
      %v558 = vsel %vm398, %v553, -inf
      %559 = vmax.xlane.f32.xlu0 %v558
      %v560 = vpop.xlane.xlu0 %559
      %v561 = vsub.f32 %v553, %v560
      %v562 = vmul.f32 %v561, 1.442695
      %v563 = vpow.pop %v562
      %v564 = vsel %vm398, %v563, 0.0
      %565 = vadd.xlane.f32.xlu0 %v564
      %v566 = vpop.xlane.xlu0 %565
      %v567 = vrcp.pop %v566
      %v568 = vmul.f32 %v563, %v567
      %v569 = vpack.c.bf16 %v568, %v568
      %570 = vrot.lane.b32.xlu0 %v388, 56
      %v571 = vpop.permute.xlu0 %570
      %v573 = vsel %vm398, %v569, 0
      %v576 = vsel %vm462, %v571, 0
      %578 = vmatprep.subr.bf16.mxu0 0
      %579 = vmatpush1.bf16.msra.mxu0 0
      %580 = vmatprep.subr.bf16.mxu0 0
      %581 = vmatpush1.bf16.msra.mxu0 0
      %582 = vmatprep.subr.bf16.mxu0 0
      %583 = vmatpush1.bf16.msra.mxu0 0
      %584 = vmatprep.subr.bf16.mxu0 0
      %585 = vmatpush1.bf16.msra.mxu0 0
      %586 = vmatprep.subr.bf16.mxu0 0
      %587 = vmatpush1.bf16.msra.mxu0 0
      %588 = vmatprep.subr.bf16.mxu0 0
      %589 = vmatpush1.bf16.msra.mxu0 0
      %590 = vmatprep.subr.bf16.mxu0 0
      %591 = vmatpush1.bf16.msra.mxu0 0
      %592 = vmatprep.subr.bf16.mxu0 0
      %593 = vmatpush1.bf16.msra.mxu0 %v576
      %594 = vmatprep.subr.bf16.mxu0 0
      %595 = vmatpush2.bf16.msra.mxu0 0
      %596 = vmatprep.subr.bf16.mxu0 0
      %597 = vmatpush2.bf16.msra.mxu0 0
      %598 = vmatprep.subr.bf16.mxu0 0
      %599 = vmatpush2.bf16.msra.mxu0 0
      %600 = vmatprep.subr.bf16.mxu0 0
      %601 = vmatpush2.bf16.msra.mxu0 0
      %602 = vmatprep.subr.bf16.mxu0 0
      %603 = vmatpush2.bf16.msra.mxu0 0
      %604 = vmatprep.subr.bf16.mxu0 0
      %605 = vmatpush2.bf16.msra.mxu0 0
      %606 = vmatprep.subr.bf16.mxu0 0
      %607 = vmatpush2.bf16.msra.mxu0 0
      %608 = vmatprep.subr.bf16.mxu0 0
      %609 = vmatpush2.bf16.msra.mxu0 0
      %610 = vmatprep.mubr.bf16.mxu0 0
      %611 = vmatmul.mubr.bf16.gmra.mxu0 %v573
      %v612 = vpop.f32.mrf.mxu0
      %v613 = vadd.f32 0.0, %v612
      %v614 = vpop.f32.mrf.mxu0
      %v615 = vpop.f32.mrf.mxu0
      %v616 = vpop.f32.mrf.mxu0
      %617 = vdwg.mxu0
      %619 = vrot.lane.b32.xlu0 %v613, 8
      %v620 = vpop.permute.xlu0 %619
      %vm622 = vcmask 130112
      %623 = vst.msk [vmem:[#allocation2] sm:$0xff] %vm622, %v620
      %624 = vrot.lane.b32.xlu0 %v387, 112
      %v625 = vpop.permute.xlu0 %624
      %626 = vrot.lane.b32.xlu0 %v388, 80
      %v627 = vpop.permute.xlu0 %626
      %v629 = vsel %vm398, %v625, 0
      %v632 = vsel %vm398, %v627, 0
      %634 = vmatprep.subr.bf16.mxu0 0
      %635 = vmatpush1.bf16.xpose.msra.mxu0 0
      %636 = vmatprep.subr.bf16.mxu0 0
      %637 = vmatpush1.bf16.xpose.msra.mxu0 0
      %638 = vmatprep.subr.bf16.mxu0 0
      %639 = vmatpush1.bf16.xpose.msra.mxu0 0
      %640 = vmatprep.subr.bf16.mxu0 0
      %641 = vmatpush1.bf16.xpose.msra.mxu0 0
      %642 = vmatprep.subr.bf16.mxu0 0
      %643 = vmatpush1.bf16.xpose.msra.mxu0 0
      %644 = vmatprep.subr.bf16.mxu0 0
      %645 = vmatpush1.bf16.xpose.msra.mxu0 0
      %646 = vmatprep.subr.bf16.mxu0 0
      %647 = vmatpush1.bf16.xpose.msra.mxu0 0
      %648 = vmatprep.subr.bf16.mxu0 0
      %649 = vmatpush1.bf16.xpose.msra.mxu0 %v632
      %650 = vmatprep.subr.bf16.mxu0 0
      %651 = vmatpush2.bf16.xpose.msra.mxu0 0
      %652 = vmatprep.subr.bf16.mxu0 0
      %653 = vmatpush2.bf16.xpose.msra.mxu0 0
      %654 = vmatprep.subr.bf16.mxu0 0
      %655 = vmatpush2.bf16.xpose.msra.mxu0 0
      %656 = vmatprep.subr.bf16.mxu0 0
      %657 = vmatpush2.bf16.xpose.msra.mxu0 0
      %658 = vmatprep.subr.bf16.mxu0 0
      %659 = vmatpush2.bf16.xpose.msra.mxu0 0
      %660 = vmatprep.subr.bf16.mxu0 0
      %661 = vmatpush2.bf16.xpose.msra.mxu0 0
      %662 = vmatprep.subr.bf16.mxu0 0
      %663 = vmatpush2.bf16.xpose.msra.mxu0 0
      %664 = vmatprep.subr.bf16.mxu0 0
      %665 = vmatpush2.bf16.xpose.msra.mxu0 0
      %666 = vmatprep.mubr.bf16.mxu0 0
      %667 = vmatmul.mubr.bf16.gmra.mxu0 %v629
      %v668 = vpop.f32.mrf.mxu0
      %v669 = vadd.f32 %v393, %v668
      %v670 = vpop.f32.mrf.mxu0
      %v671 = vpop.f32.mrf.mxu0
      %v672 = vpop.f32.mrf.mxu0
      %673 = vdwg.mxu0
      %v674 = vsel %vm398, %v669, -inf
      %675 = vmax.xlane.f32.xlu0 %v674
      %v676 = vpop.xlane.xlu0 %675
      %v677 = vsub.f32 %v669, %v676
      %v678 = vmul.f32 %v677, 1.442695
      %v679 = vpow.pop %v678
      %v680 = vsel %vm398, %v679, 0.0
      %681 = vadd.xlane.f32.xlu0 %v680
      %v682 = vpop.xlane.xlu0 %681
      %v683 = vrcp.pop %v682
      %v684 = vmul.f32 %v679, %v683
      %v685 = vpack.c.bf16 %v684, %v684
      %686 = vrot.lane.b32.xlu0 %v388, 48
      %v687 = vpop.permute.xlu0 %686
      %v689 = vsel %vm398, %v685, 0
      %v692 = vsel %vm462, %v687, 0
      %694 = vmatprep.subr.bf16.mxu0 0
      %695 = vmatpush1.bf16.msra.mxu0 0
      %696 = vmatprep.subr.bf16.mxu0 0
      %697 = vmatpush1.bf16.msra.mxu0 0
      %698 = vmatprep.subr.bf16.mxu0 0
      %699 = vmatpush1.bf16.msra.mxu0 0
      %700 = vmatprep.subr.bf16.mxu0 0
      %701 = vmatpush1.bf16.msra.mxu0 0
      %702 = vmatprep.subr.bf16.mxu0 0
      %703 = vmatpush1.bf16.msra.mxu0 0
      %704 = vmatprep.subr.bf16.mxu0 0
      %705 = vmatpush1.bf16.msra.mxu0 0
      %706 = vmatprep.subr.bf16.mxu0 0
      %707 = vmatpush1.bf16.msra.mxu0 0
      %708 = vmatprep.subr.bf16.mxu0 0
      %709 = vmatpush1.bf16.msra.mxu0 %v692
      %710 = vmatprep.subr.bf16.mxu0 0
      %711 = vmatpush2.bf16.msra.mxu0 0
      %712 = vmatprep.subr.bf16.mxu0 0
      %713 = vmatpush2.bf16.msra.mxu0 0
      %714 = vmatprep.subr.bf16.mxu0 0
      %715 = vmatpush2.bf16.msra.mxu0 0
      %716 = vmatprep.subr.bf16.mxu0 0
      %717 = vmatpush2.bf16.msra.mxu0 0
      %718 = vmatprep.subr.bf16.mxu0 0
      %719 = vmatpush2.bf16.msra.mxu0 0
      %720 = vmatprep.subr.bf16.mxu0 0
      %721 = vmatpush2.bf16.msra.mxu0 0
      %722 = vmatprep.subr.bf16.mxu0 0
      %723 = vmatpush2.bf16.msra.mxu0 0
      %724 = vmatprep.subr.bf16.mxu0 0
      %725 = vmatpush2.bf16.msra.mxu0 0
      %726 = vmatprep.mubr.bf16.mxu0 0
      %727 = vmatmul.mubr.bf16.gmra.mxu0 %v689
      %v728 = vpop.f32.mrf.mxu0
      %v729 = vadd.f32 0.0, %v728
      %v730 = vpop.f32.mrf.mxu0
      %v731 = vpop.f32.mrf.mxu0
      %v732 = vpop.f32.mrf.mxu0
      %733 = vdwg.mxu0
      %735 = vrot.lane.b32.xlu0 %v729, 16
      %v736 = vpop.permute.xlu0 %735
      %vm738 = vcmask 195712
      %739 = vst.msk [vmem:[#allocation2] sm:$0xff] %vm738, %v736
      %740 = vrot.lane.b32.xlu0 %v387, 104
      %v741 = vpop.permute.xlu0 %740
      %742 = vrot.lane.b32.xlu0 %v388, 72
      %v743 = vpop.permute.xlu0 %742
      %v745 = vsel %vm398, %v741, 0
      %v748 = vsel %vm398, %v743, 0
      %750 = vmatprep.subr.bf16.mxu0 0
      %751 = vmatpush1.bf16.xpose.msra.mxu0 0
      %752 = vmatprep.subr.bf16.mxu0 0
      %753 = vmatpush1.bf16.xpose.msra.mxu0 0
      %754 = vmatprep.subr.bf16.mxu0 0
      %755 = vmatpush1.bf16.xpose.msra.mxu0 0
      %756 = vmatprep.subr.bf16.mxu0 0
      %757 = vmatpush1.bf16.xpose.msra.mxu0 0
      %758 = vmatprep.subr.bf16.mxu0 0
      %759 = vmatpush1.bf16.xpose.msra.mxu0 0
      %760 = vmatprep.subr.bf16.mxu0 0
      %761 = vmatpush1.bf16.xpose.msra.mxu0 0
      %762 = vmatprep.subr.bf16.mxu0 0
      %763 = vmatpush1.bf16.xpose.msra.mxu0 0
      %764 = vmatprep.subr.bf16.mxu0 0
      %765 = vmatpush1.bf16.xpose.msra.mxu0 %v748
      %766 = vmatprep.subr.bf16.mxu0 0
      %767 = vmatpush2.bf16.xpose.msra.mxu0 0
      %768 = vmatprep.subr.bf16.mxu0 0
      %769 = vmatpush2.bf16.xpose.msra.mxu0 0
      %770 = vmatprep.subr.bf16.mxu0 0
      %771 = vmatpush2.bf16.xpose.msra.mxu0 0
      %772 = vmatprep.subr.bf16.mxu0 0
      %773 = vmatpush2.bf16.xpose.msra.mxu0 0
      %774 = vmatprep.subr.bf16.mxu0 0
      %775 = vmatpush2.bf16.xpose.msra.mxu0 0
      %776 = vmatprep.subr.bf16.mxu0 0
      %777 = vmatpush2.bf16.xpose.msra.mxu0 0
      %778 = vmatprep.subr.bf16.mxu0 0
      %779 = vmatpush2.bf16.xpose.msra.mxu0 0
      %780 = vmatprep.subr.bf16.mxu0 0
      %781 = vmatpush2.bf16.xpose.msra.mxu0 0
      %782 = vmatprep.mubr.bf16.mxu0 0
      %783 = vmatmul.mubr.bf16.gmra.mxu0 %v745
      %v784 = vpop.f32.mrf.mxu0
      %v785 = vadd.f32 %v393, %v784
      %v786 = vpop.f32.mrf.mxu0
      %v787 = vpop.f32.mrf.mxu0
      %v788 = vpop.f32.mrf.mxu0
      %789 = vdwg.mxu0
      %v790 = vsel %vm398, %v785, -inf
      %791 = vmax.xlane.f32.xlu0 %v790
      %v792 = vpop.xlane.xlu0 %791
      %v793 = vsub.f32 %v785, %v792
      %v794 = vmul.f32 %v793, 1.442695
      %v795 = vpow.pop %v794
      %v796 = vsel %vm398, %v795, 0.0
      %797 = vadd.xlane.f32.xlu0 %v796
      %v798 = vpop.xlane.xlu0 %797
      %v799 = vrcp.pop %v798
      %v800 = vmul.f32 %v795, %v799
      %v801 = vpack.c.bf16 %v800, %v800
      %802 = vrot.lane.b32.xlu0 %v388, 40
      %v803 = vpop.permute.xlu0 %802
      %v805 = vsel %vm398, %v801, 0
      %v808 = vsel %vm462, %v803, 0
      %810 = vmatprep.subr.bf16.mxu0 0
      %811 = vmatpush1.bf16.msra.mxu0 0
      %812 = vmatprep.subr.bf16.mxu0 0
      %813 = vmatpush1.bf16.msra.mxu0 0
      %814 = vmatprep.subr.bf16.mxu0 0
      %815 = vmatpush1.bf16.msra.mxu0 0
      %816 = vmatprep.subr.bf16.mxu0 0
      %817 = vmatpush1.bf16.msra.mxu0 0
      %818 = vmatprep.subr.bf16.mxu0 0
      %819 = vmatpush1.bf16.msra.mxu0 0
      %820 = vmatprep.subr.bf16.mxu0 0
      %821 = vmatpush1.bf16.msra.mxu0 0
      %822 = vmatprep.subr.bf16.mxu0 0
      %823 = vmatpush1.bf16.msra.mxu0 0
      %824 = vmatprep.subr.bf16.mxu0 0
      %825 = vmatpush1.bf16.msra.mxu0 %v808
      %826 = vmatprep.subr.bf16.mxu0 0
      %827 = vmatpush2.bf16.msra.mxu0 0
      %828 = vmatprep.subr.bf16.mxu0 0
      %829 = vmatpush2.bf16.msra.mxu0 0
      %830 = vmatprep.subr.bf16.mxu0 0
      %831 = vmatpush2.bf16.msra.mxu0 0
      %832 = vmatprep.subr.bf16.mxu0 0
      %833 = vmatpush2.bf16.msra.mxu0 0
      %834 = vmatprep.subr.bf16.mxu0 0
      %835 = vmatpush2.bf16.msra.mxu0 0
      %836 = vmatprep.subr.bf16.mxu0 0
      %837 = vmatpush2.bf16.msra.mxu0 0
      %838 = vmatprep.subr.bf16.mxu0 0
      %839 = vmatpush2.bf16.msra.mxu0 0
      %840 = vmatprep.subr.bf16.mxu0 0
      %841 = vmatpush2.bf16.msra.mxu0 0
      %842 = vmatprep.mubr.bf16.mxu0 0
      %843 = vmatmul.mubr.bf16.gmra.mxu0 %v805
      %v844 = vpop.f32.mrf.mxu0
      %v845 = vadd.f32 0.0, %v844
      %v846 = vpop.f32.mrf.mxu0
      %v847 = vpop.f32.mrf.mxu0
      %v848 = vpop.f32.mrf.mxu0
      %849 = vdwg.mxu0
      %851 = vrot.lane.b32.xlu0 %v845, 24
      %v852 = vpop.permute.xlu0 %851
      %vm854 = vcmask 261312
      %855 = vst.msk [vmem:[#allocation2] sm:$0xff] %vm854, %v852
      %v856 = vld [vmem:[#allocation2] sm:$0xff]
      %v857 = vpack.c.bf16 %v856, %v856
      %v858 = vld [vmem:[%s4] sm:$0xf]
      %v859 = vld [vmem:[%s4 + $0x4] sm:$0xf]
      %v860 = vld [vmem:[%s4 + $0x8] sm:$0xf]
      %v861 = vld [vmem:[%s4 + $0xc] sm:$0xf]
      %v862 = vld [vmem:[%s5] sm:$0x1]
      %v864 = vlaneseq
      %v865 = vshrl.u32 %v864, 7
      %v866 = vsub.s32 0, %v865
      %v867 = vrot.slane %v862, %v866
      %v873 = vunpack.c.l.b16 %v858
      %v874 = vunpack.c.l.b16 %v859
      %v875 = vunpack.c.l.b16 %v860
      %v876 = vunpack.c.l.b16 %v861
      %v877 = vpack.c.b16 %v874, %v873
      %v878 = vpack.c.b16 %v876, %v875
      %v882 = vsel %vm342, %v857, 0
      %884 = vmatprep.subr.bf16.mxu0 0
      %885 = vmatpush1.bf16.msra.mxu0 0
      %886 = vmatprep.subr.bf16.mxu0 0
      %887 = vmatpush1.bf16.msra.mxu0 0
      %888 = vmatprep.subr.bf16.mxu0 0
      %889 = vmatpush1.bf16.msra.mxu0 0
      %890 = vmatprep.subr.bf16.mxu0 0
      %891 = vmatpush1.bf16.msra.mxu0 0
      %892 = vmatprep.subr.bf16.mxu0 0
      %893 = vmatpush1.bf16.msra.mxu0 0
      %894 = vmatprep.subr.bf16.mxu0 0
      %895 = vmatpush1.bf16.msra.mxu0 0
      %896 = vmatprep.subr.bf16.mxu0 0
      %897 = vmatpush1.bf16.msra.mxu0 %v878
      %898 = vmatprep.subr.bf16.mxu0 0
      %899 = vmatpush1.bf16.msra.mxu0 %v877
      %900 = vmatprep.subr.bf16.mxu0 0
      %901 = vmatpush2.bf16.msra.mxu0 0
      %902 = vmatprep.subr.bf16.mxu0 0
      %903 = vmatpush2.bf16.msra.mxu0 0
      %904 = vmatprep.subr.bf16.mxu0 0
      %905 = vmatpush2.bf16.msra.mxu0 0
      %906 = vmatprep.subr.bf16.mxu0 0
      %907 = vmatpush2.bf16.msra.mxu0 0
      %908 = vmatprep.subr.bf16.mxu0 0
      %909 = vmatpush2.bf16.msra.mxu0 0
      %910 = vmatprep.subr.bf16.mxu0 0
      %911 = vmatpush2.bf16.msra.mxu0 0
      %912 = vmatprep.subr.bf16.mxu0 0
      %913 = vmatpush2.bf16.msra.mxu0 0
      %914 = vmatprep.subr.bf16.mxu0 0
      %915 = vmatpush2.bf16.msra.mxu0 0
      %916 = vmatprep.mubr.bf16.mxu0 0
      %917 = vmatmul.mubr.bf16.gmra.mxu0 %v882
      %v918 = vpop.f32.mrf.mxu0
      %v919 = vadd.f32 %v867, %v918
      %v920 = vpop.f32.mrf.mxu0
      %v921 = vpop.f32.mrf.mxu0
      %v922 = vpop.f32.mrf.mxu0
      %923 = vdwg.mxu0
      %v924 = vadd.f32 %v919, %v316
      %v925 = vsel %vm342, %v924, 0.0
      %926 = vadd.xlane.f32.xlu0 %v925
      %v927 = vpop.xlane.xlu0 %926
      %v928 = vrcp.pop 32.0
      %v929 = vmul.f32 %v927, %v928
      %v930 = vsub.f32 %v924, %v929
      %v931 = vmul.f32 %v930, %v930
      %v932 = vsel %vm342, %v931, 0.0
      %933 = vadd.xlane.f32.xlu0 %v932
      %v934 = vpop.xlane.xlu0 %933
      %v935 = vmul.f32 %v934, %v928
      %v936 = vadd.f32 %v935, 1e-05
      %v937 = vrsqrt.pop %v936
      %v938 = vmul.f32 %v930, %v937
      %v939 = vld [vmem:[%s6] sm:$0x1]
      %v941 = vlaneseq
      %v942 = vshrl.u32 %v941, 7
      %v943 = vsub.s32 0, %v942
      %v944 = vrot.slane %v939, %v943
      %v946 = vmul.f32 %v938, %v944
      %v947 = vld [vmem:[%s7] sm:$0x1]
      %v949 = vlaneseq
      %v950 = vshrl.u32 %v949, 7
      %v951 = vsub.s32 0, %v950
      %v952 = vrot.slane %v947, %v951
      %v954 = vadd.f32 %v946, %v952
      %955 = vst.msk [vmem:[%s314] sm:$0xff] %vm342, %v954
      %p956 = scmp.lt.s32.totalorder %s19, 1
      %s957 = scalar_select %p956, %s19, 1
      %s958 = smul.addr %s957, 8
      %s959 = scalar_lea.vmem %s8, %s958
      // Predicated region
      $region53: #{xlm_roberta_module_forward.6} parent=51 // pred_check
        %p960 = pneg %p215
      $region54: #{xlm_roberta_module_forward.6} parent=51 // pred_check_branch
        %962 = sbr.rel (%p960) target = $region56
      $region55: #{xlm_roberta_module_forward.6} parent=51 // pred_region
        _
      $region56: #{xlm_roberta_module_forward.6} parent=51 // pred_fallthru
        _
    $region52: #{xlm_roberta_module_forward.6} parent=5 // pred_fallthru
      _
    %p963 = scmp.le.s32.totalorder 2, %s14
    // Predicated region
    $region57: #{xlm_roberta_module_forward.6} parent=5 // pred_check
      %p964 = pneg %p963
    $region58: #{xlm_roberta_module_forward.6} parent=5 // pred_check_branch
      %966 = sbr.rel (%p964) target = $region60
    $region59: #{xlm_roberta_module_forward.6} parent=5 // pred_region
      %s967 = ssub.s32 %s14, 2
      // Predicated region
      $region61: #{xlm_roberta_module_forward.6} parent=59 // pred_check
        %p968 = pneg %p221
      $region62: #{xlm_roberta_module_forward.6} parent=59 // pred_check_branch
        %970 = sbr.rel (%p968) target = $region64
      $region63: #{xlm_roberta_module_forward.6} parent=59 // pred_region
        %p971 = scmp.lt.s32.totalorder %s20, 1
        %s972 = scalar_select %p971, %s20, 1
        %s973 = smul.addr %s972, 8
        %s974 = scalar_lea.vmem %s8, %s973
      $region64: #{xlm_roberta_module_forward.6} parent=59 // pred_fallthru
        _
    $region60: #{xlm_roberta_module_forward.6} parent=5 // pred_fallthru
      _
  $region6: #{xlm_roberta_module_forward.6} parent=0 // loop_footer
    %s18 = sadd.s32 1, %s14
  $region7: #{xlm_roberta_module_forward.6} parent=0 // loop_footer_branch
    %13 = sbr.rel target = $region3
  $region8: #{xlm_roberta_module_forward.6} parent=0 // loop_exit
    _

</llo_original>
